<compile_context>
chip_gen: v5e
topology: v5e:2x2
jax: 0.10.0
libtpu: 0.0.40
codegen_flags: <defaults>
</compile_context>

<pallas_src>
import functools

import jax
import jax.numpy as jnp
from jax import lax
from jax.experimental import pallas as pl
from jax.experimental.pallas import tpu as pltpu

EPS = 1e-5
NEG_SLOPE = 0.2
_LANE = 128


def _round_up(x, m):
    return (x + m - 1) // m * m


def _cdiv(a, b):
    return (a + b - 1) // b


def _vmem_config():
    """Generation-aware (limit, working-set budget): 128-MiB parts vs v7x's 64 MiB."""
    try:
        cap = pltpu.get_tpu_info().vmem_capacity_bytes
    except Exception:
        cap = 64 * 1024 * 1024
    if cap >= 100 * 1024 * 1024:          # v5e / v6e
        return 96 * 1024 * 1024, 56 * 1024 * 1024
    return 32 * 1024 * 1024, 20 * 1024 * 1024   # v7x


def _pick_tbh(Ho, WC, C2, Wo, Cp, KB, budget):
    """Output-row block size for phase 1 whose double-buffered slabs fit the budget."""
    tbh = max(1, min(64, _cdiv(Ho, 4)))   # >=4 blocks keeps blocking-pad waste small

    def est(t):
        return (2 * (2 * t) * WC * C2 * 2     # main input block (bf16, double-buffered)
                + 2 * 2 * WC * C2 * 2         # halo block
                + 2 * KB * C2 * Cp * 2        # resident weight (2 buffers)
                + 2 * t * Wo * Cp * 2         # bf16 conv output block (double-buffered)
                + Wo * Cp * 4                 # f32 row accumulator
                + (1 << 16))

    while tbh > 1 and est(tbh) > budget:
        tbh = _cdiv(tbh, 2)
    return tbh


def _pick_tbh2(Ho_pad, Wo, Cp, budget):
    """Largest divisor of Ho_pad that keeps phase 2's elementwise blocks in budget."""
    best = 1
    for d in range(1, Ho_pad + 1):
        if Ho_pad % d == 0 and 8 * d * Wo * Cp + (1 << 16) <= budget:
            best = d
    return best


# ----------------- phase 1: fused im2col conv (MXU) + per-channel sum / sumsq -----------
def _make_conv_stats_kernel(K, TBH, Wo, Cp, Ho, nhb_half):
    KHALF = K // 2

    def kernel(xm_ref, xh_ref, w_ref, conv_ref, sum_ref, sumsq_ref):
        # xm_ref:  [1, 2*TBH, Wo+1, 2*Cin] bf16  main padded-input rows of this block
        # xh_ref:  [1, 2,     Wo+1, 2*Cin] bf16  2-row bottom halo
        # w_ref:   [K*(K//2), 2*Cin, Cp]   bf16  resident (constant index_map)
        # conv_ref:[1, TBH, Wo, Cp]        bf16  conv output block
        # sum_ref / sumsq_ref: [1, 1, Cp]  f32   per-core resident accumulators

        @pl.when(jnp.logical_and(pl.program_id(1) == 0, pl.program_id(2) == 0))
        def _init():
            sum_ref[...] = jnp.zeros_like(sum_ref)
            sumsq_ref[...] = jnp.zeros_like(sumsq_ref)

        hb = pl.program_id(0) * nhb_half + pl.program_id(2)   # global row-block index

        def compute_row(load_row):
            acc = jnp.zeros((Wo, Cp), jnp.float32)
            for kh in range(K):
                row = load_row(kh)                      # [Wo+1, 2*Cin] bf16
                for b in range(KHALF):
                    # kw = 2*b + dw is folded into the packed channel dim of `row`
                    acc += jnp.dot(row[b:b + Wo, :], w_ref[kh * KHALF + b],
                                   preferred_element_type=jnp.float32)
            return acc

        def emit(r, acc):
            # Mask rows that exist only for blocking padding so BN stats stay exact.
            valid = (hb * TBH + r) < Ho
            acc = jnp.where(valid, acc, 0.0)
            conv_ref[0, r] = acc.astype(conv_ref.dtype)            # bf16 store
            # BN statistics from the pre-cast f32 accumulator.
            sum_ref[0, :, :] += jnp.sum(acc, axis=0, keepdims=True)
            sumsq_ref[0, :, :] += jnp.sum(acc * acc, axis=0, keepdims=True)

        # Rows 0 .. TBH-2: all K input rows come from the main block.
        if TBH > 1:
            @pl.loop(0, TBH - 1)
            def _body(r):
                emit(r, compute_row(lambda kh: xm_ref[0, 2 * r + kh]))

        # Last row: kh in {0,1} from the main block, kh in {2,3} from the halo.
        r_last = TBH - 1
        emit(r_last, compute_row(
            lambda kh: xm_ref[0, 2 * r_last + kh] if kh < 2 else xh_ref[0, kh - 2]))

    return kernel


# ----------------- phase 2: fused BN affine + LeakyReLU (f32 compute, bf16 store) -------
def _norm_lrelu_kernel(conv_ref, scale_ref, shift_ref, o_ref):
    y = conv_ref[...].astype(jnp.float32) * scale_ref[...] + shift_ref[...]
    o_ref[...] = jnp.where(y > 0, y, NEG_SLOPE * y).astype(o_ref.dtype)


def discriminator_block(x_nchw, weight, gamma, beta, *, stride=2, padding=1):
    """x_nchw: [N, Cin, H, W]; weight: [Cout, Cin, K, K] (PyTorch layout)."""
    N, Cin, H, W = x_nchw.shape
    Cout, Cin_w, K, K2 = weight.shape
    assert Cin_w == Cin and K == K2
    assert stride == 2 and K == 4, "specialized to the module defaults k=4, s=2"

    Ho = (H + 2 * padding - K) // stride + 1
    Wo = (W + 2 * padding - K) // stride + 1
    M = N * Ho * Wo
    C2 = 2 * Cin                      # pair-packed channel dim
    Cp = _round_up(Cout, _LANE)       # lane-dense output channels
    KB = K * (K // 2)                 # number of (kh, column-pair) matmuls = 8
    WC = Wo + 1                       # columns of the pair-packed padded input

    vmem_limit, budget = _vmem_config()
    TBH = _pick_tbh(Ho, WC, C2, Wo, Cp, KB, budget)
    nhb = _cdiv(Ho, TBH)
    nhb_half = _cdiv(nhb, 2)          # leading size-2 "parallel" axis -> both TCs on v7x
    Ho_pad = 2 * nhb_half * TBH

    # ---- layout glue (~1x input HBM; NO im2col materialization) ----
    # NCHW -> NHWC (interface boundary only; TODO(synk): stay NHWC across stacked
    # blocks), conv zero-padding + blocking padding, then a free reshape that packs
    # each horizontal pixel pair into channels so the stride-2 window is a
    # contiguous in-kernel slice.
    x = jnp.transpose(x_nchw, (0, 2, 3, 1)).astype(jnp.bfloat16)
    Hp_tot = 2 * Ho_pad + 2
    Wp_tot = 2 * Wo + 2
    pad_b = Hp_tot - H - padding
    pad_r = Wp_tot - W - padding
    assert pad_b >= 0 and pad_r >= 0
    x = jnp.pad(x, ((0, 0), (padding, pad_b), (padding, pad_r), (0, 0)))
    xr = x.reshape(N, Hp_tot, WC, C2)                                  # [N, Hp, Wo+1, 2Cin]

    # weight [Cout, Cin, kh, kw] -> [kh, kw, Cin, Cout] -> [kh, b, dw*Cin+ci, co]
    wr = jnp.transpose(weight, (2, 3, 1, 0)).astype(jnp.float32)       # [K, K, Cin, Cout]
    wr = wr.reshape(K, K // 2, 2 * Cin, Cout).reshape(KB, C2, Cout)
    wr = jnp.pad(wr, ((0, 0), (0, 0), (0, Cp - Cout))).astype(jnp.bfloat16)

    # ---- phase 1: fused conv + batch-stat accumulation ----
    kernel1 = _make_conv_stats_kernel(K, TBH, Wo, Cp, Ho, nhb_half)
    conv, s1, s2 = pl.pallas_call(
        kernel1,
        out_shape=(
            jax.ShapeDtypeStruct((N, Ho_pad, Wo, Cp), jnp.bfloat16),   # bf16 intermediate
            jax.ShapeDtypeStruct((2, 1, Cp), jnp.float32),             # per-core sums
            jax.ShapeDtypeStruct((2, 1, Cp), jnp.float32),             # per-core sumsqs
        ),
        grid=(2, N, nhb_half),
        in_specs=[
            pl.BlockSpec((1, 2 * TBH, WC, C2),
                         lambda c, n, j: (n, c * nhb_half + j, 0, 0)),          # main rows
            pl.BlockSpec((1, 2, WC, C2),
                         lambda c, n, j: (n, (c * nhb_half + j + 1) * TBH, 0, 0)),  # halo
            pl.BlockSpec((KB, C2, Cp), lambda c, n, j: (0, 0, 0)),              # weight
        ],
        out_specs=[
            pl.BlockSpec((1, TBH, Wo, Cp),
                         lambda c, n, j: (n, c * nhb_half + j, 0, 0)),
            pl.BlockSpec((1, 1, Cp), lambda c, n, j: (c, 0, 0)),
            pl.BlockSpec((1, 1, Cp), lambda c, n, j: (c, 0, 0)),
        ],
        compiler_params=pltpu.CompilerParams(
            dimension_semantics=("parallel", "arbitrary", "arbitrary"),
            vmem_limit_bytes=vmem_limit,
        ),
    )(xr, xr, wr)

    # ---- tiny O(Cout) fold of BN parameters from the accumulated statistics ----
    # TODO(synk): switch to a centered / Welford combine if single-pass E[x^2]-E[x]^2
    # shows drift at production sizes.
    inv_m = jnp.float32(1.0 / M)                       # real M; pad rows contribute 0
    csum = jnp.sum(s1, axis=0)                         # [1, Cp]
    csumsq = jnp.sum(s2, axis=0)                       # [1, Cp]
    mean = csum * inv_m
    var = jnp.maximum(csumsq * inv_m - mean * mean, 0.0)
    inv_std = lax.rsqrt(var + EPS)
    gamma_p = jnp.pad(gamma.astype(jnp.float32).reshape(1, Cout), ((0, 0), (0, Cp - Cout)))
    beta_p = jnp.pad(beta.astype(jnp.float32).reshape(1, Cout), ((0, 0), (0, Cp - Cout)))
    scale = gamma_p * inv_std                          # [1, Cp]
    shift = beta_p - mean * scale                      # [1, Cp]

    # ---- phase 2: fused normalize + LeakyReLU, in place on the conv buffer ----
    TBH2 = _pick_tbh2(Ho_pad, Wo, Cp, budget)
    out = pl.pallas_call(
        _norm_lrelu_kernel,
        out_shape=jax.ShapeDtypeStruct((N, Ho_pad, Wo, Cp), jnp.bfloat16),
        grid=(N, Ho_pad // TBH2),
        in_specs=[
            pl.BlockSpec((1, TBH2, Wo, Cp), lambda n, h: (n, h, 0, 0)),
            pl.BlockSpec((1, Cp), lambda n, h: (0, 0)),
            pl.BlockSpec((1, Cp), lambda n, h: (0, 0)),
        ],
        out_specs=pl.BlockSpec((1, TBH2, Wo, Cp), lambda n, h: (n, h, 0, 0)),
        input_output_aliases={0: 0},
        compiler_params=pltpu.CompilerParams(
            dimension_semantics=("parallel", "parallel"),
            vmem_limit_bytes=vmem_limit,
        ),
    )(conv, scale, shift)

    # Strip blocking/channel padding; convert back to NCHW f32 at the module boundary.
    out = out[:, :Ho, :, :Cout].astype(jnp.float32)
    return jnp.transpose(out, (0, 3, 1, 2))


def _reference(x_nchw, weight, gamma, beta, *, stride=2, padding=1):
    """Pure-JAX reference matching PyTorch semantics (training-mode BatchNorm)."""
    conv = lax.conv_general_dilated(
        x_nchw.astype(jnp.float32), weight.astype(jnp.float32),
        window_strides=(stride, stride),
        padding=[(padding, padding), (padding, padding)],
        dimension_numbers=("NCHW", "OIHW", "NCHW"),
    )
    mean = jnp.mean(conv, axis=(0, 2, 3), keepdims=True)
    var = jnp.mean((conv - mean) ** 2, axis=(0, 2, 3), keepdims=True)
    y = (conv - mean) * lax.rsqrt(var + EPS) * gamma.reshape(1, -1, 1, 1) \
        + beta.reshape(1, -1, 1, 1)
    return jnp.where(y > 0, y, NEG_SLOPE * y)


if __name__ == "__main__":
    # Small shapes consistent with the module: N=2, Cin=4, Cout=8, H=W=16, K=4.
    N, Cin, Cout, H, W, K = 2, 4, 8, 16, 16, 4

    key = jax.random.PRNGKey(0)
    kx, kw, kg, kb = jax.random.split(key, 4)
    x = jax.random.normal(kx, (N, Cin, H, W), dtype=jnp.float32)
    weight = 0.1 * jax.random.normal(kw, (Cout, Cin, K, K), dtype=jnp.float32)
    gamma = 1.0 + 0.1 * jax.random.normal(kg, (Cout,), dtype=jnp.float32)
    beta = 0.1 * jax.random.normal(kb, (Cout,), dtype=jnp.float32)

    fn = jax.jit(functools.partial(discriminator_block, stride=2, padding=1))
    out = jax.block_until_ready(fn(x, weight, gamma, beta))
    assert out.shape == (N, Cout, H // 2, W // 2), out.shape

    # Module-semantics reference (f32 conv); tolerance covers bf16 matmul inputs and
    # the bf16 activation intermediate (statistics are accumulated in f32).
    ref = _reference(x, weight, gamma, beta, stride=2, padding=1)
    err = float(jnp.max(jnp.abs(out - ref)))
    assert jnp.allclose(out, ref, rtol=5e-2, atol=5e-2), f"max abs err {err}"

    print("KERNEL_OK")
</pallas_src>

<mosaic_0001>
module attributes {stable_mosaic.version = 11 : i64} {
  func.func @kernel(%arg0: i32, %arg1: i32, %arg2: i32, %arg3: memref<1x4x9x8xbf16, #tpu.memory_space<vmem>>, %arg4: memref<1x2x9x8xbf16, #tpu.memory_space<vmem>>, %arg5: memref<8x8x128xbf16, #tpu.memory_space<vmem>>, %arg6: memref<1x2x8x128xbf16, #tpu.memory_space<vmem>>, %arg7: memref<1x1x128xf32, #tpu.memory_space<vmem>>, %arg8: memref<1x1x128xf32, #tpu.memory_space<vmem>>) attributes {dimension_semantics = [#tpu.dimension_semantics<parallel>, #tpu.dimension_semantics<arbitrary>, #tpu.dimension_semantics<arbitrary>], iteration_bounds = array<i64: 2, 2, 2>, scalar_prefetch = 0 : i64, scratch_operands = 0 : i64, tpu.core_type = #tpu.core_type<tc>, window_params = [{transform_indices = @transform_0, window_bounds = array<i64: 1, 4, 9, 8>}, {transform_indices = @transform_1, window_bounds = array<i64: 1, 2, 9, 8>}, {pipeline_mode = #tpu.pipeline_mode<synchronous>, transform_indices = @transform_2, window_bounds = array<i64: 8, 8, 128>}, {transform_indices = @transform_3, window_bounds = array<i64: 1, 2, 8, 128>}, {transform_indices = @transform_4, window_bounds = array<i64: 1, 1, 128>}, {transform_indices = @transform_5, window_bounds = array<i64: 1, 1, 128>}]} {
    %c0_i32 = arith.constant 0 : i32
    %0 = arith.cmpi eq, %arg1, %c0_i32 : i32
    %c0_i32_0 = arith.constant 0 : i32
    %1 = arith.cmpi eq, %arg2, %c0_i32_0 : i32
    %2 = arith.andi %0, %1 : i1
    %3 = arith.extui %2 : i1 to i32
    %c0_i32_1 = arith.constant 0 : i32
    %4 = arith.cmpi ne, %3, %c0_i32_1 : i32
    scf.if %4 {
      %cst_138 = arith.constant 0.000000e+00 : f32
      %172 = vector.broadcast %cst_138 : f32 to vector<1x1x128xf32>
      %c0_139 = arith.constant 0 : index
      %c0_140 = arith.constant 0 : index
      %c0_141 = arith.constant 0 : index
      %173 = vector.load %arg7[%c0_139, %c0_140, %c0_141] : memref<1x1x128xf32, #tpu.memory_space<vmem>>, vector<1x1x128xf32>
      tpu.vector_store %arg7[%c0_139, %c0_140, %c0_141], %172 {strides = array<i32>} : memref<1x1x128xf32, #tpu.memory_space<vmem>>, vector<1x1x128xf32>,
      %cst_142 = arith.constant 0.000000e+00 : f32
      %174 = vector.broadcast %cst_142 : f32 to vector<1x1x128xf32>
      %c0_143 = arith.constant 0 : index
      %c0_144 = arith.constant 0 : index
      %c0_145 = arith.constant 0 : index
      %175 = vector.load %arg8[%c0_143, %c0_144, %c0_145] : memref<1x1x128xf32, #tpu.memory_space<vmem>>, vector<1x1x128xf32>
      tpu.vector_store %arg8[%c0_143, %c0_144, %c0_145], %174 {strides = array<i32>} : memref<1x1x128xf32, #tpu.memory_space<vmem>>, vector<1x1x128xf32>,
    } else {
    }
    %c2_i32 = arith.constant 2 : i32
    %5 = arith.muli %arg0, %c2_i32 : i32
    %6 = arith.addi %5, %arg2 : i32
    %c0_i32_2 = arith.constant 0 : i32
    %c1_i32 = arith.constant 1 : i32
    %7 = arith.muli %c0_i32_2, %c1_i32 : i32
    %c0_i32_3 = arith.constant 0 : i32
    %8 = arith.addi %c0_i32_3, %7 : i32
    %cst = arith.constant 0.000000e+00 : f32
    %9 = vector.broadcast %cst : f32 to vector<8x128xf32>
    %c2_i32_4 = arith.constant 2 : i32
    %10 = arith.muli %c2_i32_4, %8 : i32
    %c0_i32_5 = arith.constant 0 : i32
    %11 = arith.addi %10, %c0_i32_5 : i32
    %c0 = arith.constant 0 : index
    %12 = arith.index_cast %11 : i32 to index
    %c0_6 = arith.constant 0 : index
    %c0_7 = arith.constant 0 : index
    %13 = vector.load %arg3[%c0, %12, %c0_6, %c0_7] : memref<1x4x9x8xbf16, #tpu.memory_space<vmem>>, vector<1x1x9x8xbf16>
    %14 = vector.shape_cast %13 : vector<1x1x9x8xbf16> to vector<9x8xbf16>
    %15 = vector.extract_strided_slice %14 {offsets = [0, 0], sizes = [8, 8], strides = [1, 1]} : vector<9x8xbf16> to vector<8x8xbf16>
    %c0_8 = arith.constant 0 : index
    %c0_9 = arith.constant 0 : index
    %c0_10 = arith.constant 0 : index
    %16 = vector.load %arg5[%c0_8, %c0_9, %c0_10] : memref<8x8x128xbf16, #tpu.memory_space<vmem>>, vector<1x8x128xbf16>
    %17 = vector.shape_cast %16 : vector<1x8x128xbf16> to vector<8x128xbf16>
    %cst_11 = arith.constant dense<0.000000e+00> : vector<8x128xf32>
    %18 = tpu.matmul %15, %17, %cst_11 {dimension_numbers = #tpu.dot_dimension_numbers<[1], [0], [0], [1], [0, 0, 1, 1], [], []>} : vector<8x8xbf16>, vector<8x128xbf16>, vector<8x128xf32> -> vector<8x128xf32>
    %19 = arith.addf %9, %18 : vector<8x128xf32>
    %20 = vector.extract_strided_slice %14 {offsets = [1, 0], sizes = [8, 8], strides = [1, 1]} : vector<9x8xbf16> to vector<8x8xbf16>
    %c1 = arith.constant 1 : index
    %c0_12 = arith.constant 0 : index
    %c0_13 = arith.constant 0 : index
    %21 = vector.load %arg5[%c1, %c0_12, %c0_13] : memref<8x8x128xbf16, #tpu.memory_space<vmem>>, vector<1x8x128xbf16>
    %22 = vector.shape_cast %21 : vector<1x8x128xbf16> to vector<8x128xbf16>
    %cst_14 = arith.constant dense<0.000000e+00> : vector<8x128xf32>
    %23 = tpu.matmul %20, %22, %cst_14 {dimension_numbers = #tpu.dot_dimension_numbers<[1], [0], [0], [1], [0, 0, 1, 1], [], []>} : vector<8x8xbf16>, vector<8x128xbf16>, vector<8x128xf32> -> vector<8x128xf32>
    %24 = arith.addf %19, %23 : vector<8x128xf32>
    %c2_i32_15 = arith.constant 2 : i32
    %25 = arith.muli %c2_i32_15, %8 : i32
    %c1_i32_16 = arith.constant 1 : i32
    %26 = arith.addi %25, %c1_i32_16 : i32
    %c0_17 = arith.constant 0 : index
    %27 = arith.index_cast %26 : i32 to index
    %c0_18 = arith.constant 0 : index
    %c0_19 = arith.constant 0 : index
    %28 = vector.load %arg3[%c0_17, %27, %c0_18, %c0_19] : memref<1x4x9x8xbf16, #tpu.memory_space<vmem>>, vector<1x1x9x8xbf16>
    %29 = vector.shape_cast %28 : vector<1x1x9x8xbf16> to vector<9x8xbf16>
    %30 = vector.extract_strided_slice %29 {offsets = [0, 0], sizes = [8, 8], strides = [1, 1]} : vector<9x8xbf16> to vector<8x8xbf16>
    %c2 = arith.constant 2 : index
    %c0_20 = arith.constant 0 : index
    %c0_21 = arith.constant 0 : index
    %31 = vector.load %arg5[%c2, %c0_20, %c0_21] : memref<8x8x128xbf16, #tpu.memory_space<vmem>>, vector<1x8x128xbf16>
    %32 = vector.shape_cast %31 : vector<1x8x128xbf16> to vector<8x128xbf16>
    %cst_22 = arith.constant dense<0.000000e+00> : vector<8x128xf32>
    %33 = tpu.matmul %30, %32, %cst_22 {dimension_numbers = #tpu.dot_dimension_numbers<[1], [0], [0], [1], [0, 0, 1, 1], [], []>} : vector<8x8xbf16>, vector<8x128xbf16>, vector<8x128xf32> -> vector<8x128xf32>
    %34 = arith.addf %24, %33 : vector<8x128xf32>
    %35 = vector.extract_strided_slice %29 {offsets = [1, 0], sizes = [8, 8], strides = [1, 1]} : vector<9x8xbf16> to vector<8x8xbf16>
    %c3 = arith.constant 3 : index
    %c0_23 = arith.constant 0 : index
    %c0_24 = arith.constant 0 : index
    %36 = vector.load %arg5[%c3, %c0_23, %c0_24] : memref<8x8x128xbf16, #tpu.memory_space<vmem>>, vector<1x8x128xbf16>
    %37 = vector.shape_cast %36 : vector<1x8x128xbf16> to vector<8x128xbf16>
    %cst_25 = arith.constant dense<0.000000e+00> : vector<8x128xf32>
    %38 = tpu.matmul %35, %37, %cst_25 {dimension_numbers = #tpu.dot_dimension_numbers<[1], [0], [0], [1], [0, 0, 1, 1], [], []>} : vector<8x8xbf16>, vector<8x128xbf16>, vector<8x128xf32> -> vector<8x128xf32>
    %39 = arith.addf %34, %38 : vector<8x128xf32>
    %c2_i32_26 = arith.constant 2 : i32
    %40 = arith.muli %c2_i32_26, %8 : i32
    %c2_i32_27 = arith.constant 2 : i32
    %41 = arith.addi %40, %c2_i32_27 : i32
    %c0_28 = arith.constant 0 : index
    %42 = arith.index_cast %41 : i32 to index
    %c0_29 = arith.constant 0 : index
    %c0_30 = arith.constant 0 : index
    %43 = vector.load %arg3[%c0_28, %42, %c0_29, %c0_30] : memref<1x4x9x8xbf16, #tpu.memory_space<vmem>>, vector<1x1x9x8xbf16>
    %44 = vector.shape_cast %43 : vector<1x1x9x8xbf16> to vector<9x8xbf16>
    %45 = vector.extract_strided_slice %44 {offsets = [0, 0], sizes = [8, 8], strides = [1, 1]} : vector<9x8xbf16> to vector<8x8xbf16>
    %c4 = arith.constant 4 : index
    %c0_31 = arith.constant 0 : index
    %c0_32 = arith.constant 0 : index
    %46 = vector.load %arg5[%c4, %c0_31, %c0_32] : memref<8x8x128xbf16, #tpu.memory_space<vmem>>, vector<1x8x128xbf16>
    %47 = vector.shape_cast %46 : vector<1x8x128xbf16> to vector<8x128xbf16>
    %cst_33 = arith.constant dense<0.000000e+00> : vector<8x128xf32>
    %48 = tpu.matmul %45, %47, %cst_33 {dimension_numbers = #tpu.dot_dimension_numbers<[1], [0], [0], [1], [0, 0, 1, 1], [], []>} : vector<8x8xbf16>, vector<8x128xbf16>, vector<8x128xf32> -> vector<8x128xf32>
    %49 = arith.addf %39, %48 : vector<8x128xf32>
    %50 = vector.extract_strided_slice %44 {offsets = [1, 0], sizes = [8, 8], strides = [1, 1]} : vector<9x8xbf16> to vector<8x8xbf16>
    %c5 = arith.constant 5 : index
    %c0_34 = arith.constant 0 : index
    %c0_35 = arith.constant 0 : index
    %51 = vector.load %arg5[%c5, %c0_34, %c0_35] : memref<8x8x128xbf16, #tpu.memory_space<vmem>>, vector<1x8x128xbf16>
    %52 = vector.shape_cast %51 : vector<1x8x128xbf16> to vector<8x128xbf16>
    %cst_36 = arith.constant dense<0.000000e+00> : vector<8x128xf32>
    %53 = tpu.matmul %50, %52, %cst_36 {dimension_numbers = #tpu.dot_dimension_numbers<[1], [0], [0], [1], [0, 0, 1, 1], [], []>} : vector<8x8xbf16>, vector<8x128xbf16>, vector<8x128xf32> -> vector<8x128xf32>
    %54 = arith.addf %49, %53 : vector<8x128xf32>
    %c2_i32_37 = arith.constant 2 : i32
    %55 = arith.muli %c2_i32_37, %8 : i32
    %c3_i32 = arith.constant 3 : i32
    %56 = arith.addi %55, %c3_i32 : i32
    %c0_38 = arith.constant 0 : index
    %57 = arith.index_cast %56 : i32 to index
    %c0_39 = arith.constant 0 : index
    %c0_40 = arith.constant 0 : index
    %58 = vector.load %arg3[%c0_38, %57, %c0_39, %c0_40] : memref<1x4x9x8xbf16, #tpu.memory_space<vmem>>, vector<1x1x9x8xbf16>
    %59 = vector.shape_cast %58 : vector<1x1x9x8xbf16> to vector<9x8xbf16>
    %60 = vector.extract_strided_slice %59 {offsets = [0, 0], sizes = [8, 8], strides = [1, 1]} : vector<9x8xbf16> to vector<8x8xbf16>
    %c6 = arith.constant 6 : index
    %c0_41 = arith.constant 0 : index
    %c0_42 = arith.constant 0 : index
    %61 = vector.load %arg5[%c6, %c0_41, %c0_42] : memref<8x8x128xbf16, #tpu.memory_space<vmem>>, vector<1x8x128xbf16>
    %62 = vector.shape_cast %61 : vector<1x8x128xbf16> to vector<8x128xbf16>
    %cst_43 = arith.constant dense<0.000000e+00> : vector<8x128xf32>
    %63 = tpu.matmul %60, %62, %cst_43 {dimension_numbers = #tpu.dot_dimension_numbers<[1], [0], [0], [1], [0, 0, 1, 1], [], []>} : vector<8x8xbf16>, vector<8x128xbf16>, vector<8x128xf32> -> vector<8x128xf32>
    %64 = arith.addf %54, %63 : vector<8x128xf32>
    %65 = vector.extract_strided_slice %59 {offsets = [1, 0], sizes = [8, 8], strides = [1, 1]} : vector<9x8xbf16> to vector<8x8xbf16>
    %c7 = arith.constant 7 : index
    %c0_44 = arith.constant 0 : index
    %c0_45 = arith.constant 0 : index
    %66 = vector.load %arg5[%c7, %c0_44, %c0_45] : memref<8x8x128xbf16, #tpu.memory_space<vmem>>, vector<1x8x128xbf16>
    %67 = vector.shape_cast %66 : vector<1x8x128xbf16> to vector<8x128xbf16>
    %cst_46 = arith.constant dense<0.000000e+00> : vector<8x128xf32>
    %68 = tpu.matmul %65, %67, %cst_46 {dimension_numbers = #tpu.dot_dimension_numbers<[1], [0], [0], [1], [0, 0, 1, 1], [], []>} : vector<8x8xbf16>, vector<8x128xbf16>, vector<8x128xf32> -> vector<8x128xf32>
    %69 = arith.addf %64, %68 : vector<8x128xf32>
    %c2_i32_47 = arith.constant 2 : i32
    %70 = arith.muli %6, %c2_i32_47 : i32
    %71 = arith.addi %70, %8 : i32
    %c8_i32 = arith.constant 8 : i32
    %72 = arith.cmpi slt, %71, %c8_i32 : i32
    %cst_48 = arith.constant 0.000000e+00 : f32
    %73 = vector.broadcast %cst_48 : f32 to vector<8x128xf32>
    %74 = arith.select %72, %69, %73 : vector<8x128xf32>
    %75 = arith.truncf %74 : vector<8x128xf32> to vector<8x128xbf16>
    %c0_49 = arith.constant 0 : index
    %76 = arith.index_cast %8 : i32 to index
    %c0_50 = arith.constant 0 : index
    %c0_51 = arith.constant 0 : index
    %77 = vector.load %arg6[%c0_49, %76, %c0_50, %c0_51] : memref<1x2x8x128xbf16, #tpu.memory_space<vmem>>, vector<1x1x8x128xbf16>
    %78 = vector.shape_cast %77 : vector<1x1x8x128xbf16> to vector<8x128xbf16>
    %79 = vector.shape_cast %75 : vector<8x128xbf16> to vector<1x1x8x128xbf16>
    tpu.vector_store %arg6[%c0_49, %76, %c0_50, %c0_51], %79 {strides = array<i32>} : memref<1x2x8x128xbf16, #tpu.memory_space<vmem>>, vector<1x1x8x128xbf16>,
    %c0_52 = arith.constant 0 : index
    %c0_53 = arith.constant 0 : index
    %c0_54 = arith.constant 0 : index
    %80 = vector.load %arg7[%c0_52, %c0_53, %c0_54] : memref<1x1x128xf32, #tpu.memory_space<vmem>>, vector<1x1x128xf32>
    %81 = vector.shape_cast %80 : vector<1x1x128xf32> to vector<1x128xf32>
    %cst_55 = arith.constant dense<0.000000e+00> : vector<128xf32>
    %82 = vector.multi_reduction <add>, %74, %cst_55 [0] : vector<8x128xf32> to vector<128xf32>
    %83 = vector.shape_cast %82 : vector<128xf32> to vector<1x128xf32>
    %84 = arith.addf %81, %83 : vector<1x128xf32>
    %c0_56 = arith.constant 0 : index
    %c0_57 = arith.constant 0 : index
    %c0_58 = arith.constant 0 : index
    %85 = vector.load %arg7[%c0_56, %c0_57, %c0_58] : memref<1x1x128xf32, #tpu.memory_space<vmem>>, vector<1x1x128xf32>
    %86 = vector.shape_cast %85 : vector<1x1x128xf32> to vector<1x128xf32>
    %87 = vector.shape_cast %84 : vector<1x128xf32> to vector<1x1x128xf32>
    tpu.vector_store %arg7[%c0_56, %c0_57, %c0_58], %87 {strides = array<i32>} : memref<1x1x128xf32, #tpu.memory_space<vmem>>, vector<1x1x128xf32>,
    %c0_59 = arith.constant 0 : index
    %c0_60 = arith.constant 0 : index
    %c0_61 = arith.constant 0 : index
    %88 = vector.load %arg8[%c0_59, %c0_60, %c0_61] : memref<1x1x128xf32, #tpu.memory_space<vmem>>, vector<1x1x128xf32>
    %89 = vector.shape_cast %88 : vector<1x1x128xf32> to vector<1x128xf32>
    %90 = arith.mulf %74, %74 : vector<8x128xf32>
    %cst_62 = arith.constant dense<0.000000e+00> : vector<128xf32>
    %91 = vector.multi_reduction <add>, %90, %cst_62 [0] : vector<8x128xf32> to vector<128xf32>
    %92 = vector.shape_cast %91 : vector<128xf32> to vector<1x128xf32>
    %93 = arith.addf %89, %92 : vector<1x128xf32>
    %c0_63 = arith.constant 0 : index
    %c0_64 = arith.constant 0 : index
    %c0_65 = arith.constant 0 : index
    %94 = vector.load %arg8[%c0_63, %c0_64, %c0_65] : memref<1x1x128xf32, #tpu.memory_space<vmem>>, vector<1x1x128xf32>
    %95 = vector.shape_cast %94 : vector<1x1x128xf32> to vector<1x128xf32>
    %96 = vector.shape_cast %93 : vector<1x128xf32> to vector<1x1x128xf32>
    tpu.vector_store %arg8[%c0_63, %c0_64, %c0_65], %96 {strides = array<i32>} : memref<1x1x128xf32, #tpu.memory_space<vmem>>, vector<1x1x128xf32>,
    %c1_i32_66 = arith.constant 1 : i32
    %cst_67 = arith.constant 0.000000e+00 : f32
    %97 = vector.broadcast %cst_67 : f32 to vector<8x128xf32>
    %c0_68 = arith.constant 0 : index
    %c2_69 = arith.constant 2 : index
    %c0_70 = arith.constant 0 : index
    %c0_71 = arith.constant 0 : index
    %98 = vector.load %arg3[%c0_68, %c2_69, %c0_70, %c0_71] : memref<1x4x9x8xbf16, #tpu.memory_space<vmem>>, vector<1x1x9x8xbf16>
    %99 = vector.shape_cast %98 : vector<1x1x9x8xbf16> to vector<9x8xbf16>
    %100 = vector.extract_strided_slice %99 {offsets = [0, 0], sizes = [8, 8], strides = [1, 1]} : vector<9x8xbf16> to vector<8x8xbf16>
    %c0_72 = arith.constant 0 : index
    %c0_73 = arith.constant 0 : index
    %c0_74 = arith.constant 0 : index
    %101 = vector.load %arg5[%c0_72, %c0_73, %c0_74] : memref<8x8x128xbf16, #tpu.memory_space<vmem>>, vector<1x8x128xbf16>
    %102 = vector.shape_cast %101 : vector<1x8x128xbf16> to vector<8x128xbf16>
    %cst_75 = arith.constant dense<0.000000e+00> : vector<8x128xf32>
    %103 = tpu.matmul %100, %102, %cst_75 {dimension_numbers = #tpu.dot_dimension_numbers<[1], [0], [0], [1], [0, 0, 1, 1], [], []>} : vector<8x8xbf16>, vector<8x128xbf16>, vector<8x128xf32> -> vector<8x128xf32>
    %104 = arith.addf %97, %103 : vector<8x128xf32>
    %105 = vector.extract_strided_slice %99 {offsets = [1, 0], sizes = [8, 8], strides = [1, 1]} : vector<9x8xbf16> to vector<8x8xbf16>
    %c1_76 = arith.constant 1 : index
    %c0_77 = arith.constant 0 : index
    %c0_78 = arith.constant 0 : index
    %106 = vector.load %arg5[%c1_76, %c0_77, %c0_78] : memref<8x8x128xbf16, #tpu.memory_space<vmem>>, vector<1x8x128xbf16>
    %107 = vector.shape_cast %106 : vector<1x8x128xbf16> to vector<8x128xbf16>
    %cst_79 = arith.constant dense<0.000000e+00> : vector<8x128xf32>
    %108 = tpu.matmul %105, %107, %cst_79 {dimension_numbers = #tpu.dot_dimension_numbers<[1], [0], [0], [1], [0, 0, 1, 1], [], []>} : vector<8x8xbf16>, vector<8x128xbf16>, vector<8x128xf32> -> vector<8x128xf32>
    %109 = arith.addf %104, %108 : vector<8x128xf32>
    %c0_80 = arith.constant 0 : index
    %c3_81 = arith.constant 3 : index
    %c0_82 = arith.constant 0 : index
    %c0_83 = arith.constant 0 : index
    %110 = vector.load %arg3[%c0_80, %c3_81, %c0_82, %c0_83] : memref<1x4x9x8xbf16, #tpu.memory_space<vmem>>, vector<1x1x9x8xbf16>
    %111 = vector.shape_cast %110 : vector<1x1x9x8xbf16> to vector<9x8xbf16>
    %112 = vector.extract_strided_slice %111 {offsets = [0, 0], sizes = [8, 8], strides = [1, 1]} : vector<9x8xbf16> to vector<8x8xbf16>
    %c2_84 = arith.constant 2 : index
    %c0_85 = arith.constant 0 : index
    %c0_86 = arith.constant 0 : index
    %113 = vector.load %arg5[%c2_84, %c0_85, %c0_86] : memref<8x8x128xbf16, #tpu.memory_space<vmem>>, vector<1x8x128xbf16>
    %114 = vector.shape_cast %113 : vector<1x8x128xbf16> to vector<8x128xbf16>
    %cst_87 = arith.constant dense<0.000000e+00> : vector<8x128xf32>
    %115 = tpu.matmul %112, %114, %cst_87 {dimension_numbers = #tpu.dot_dimension_numbers<[1], [0], [0], [1], [0, 0, 1, 1], [], []>} : vector<8x8xbf16>, vector<8x128xbf16>, vector<8x128xf32> -> vector<8x128xf32>
    %116 = arith.addf %109, %115 : vector<8x128xf32>
    %117 = vector.extract_strided_slice %111 {offsets = [1, 0], sizes = [8, 8], strides = [1, 1]} : vector<9x8xbf16> to vector<8x8xbf16>
    %c3_88 = arith.constant 3 : index
    %c0_89 = arith.constant 0 : index
    %c0_90 = arith.constant 0 : index
    %118 = vector.load %arg5[%c3_88, %c0_89, %c0_90] : memref<8x8x128xbf16, #tpu.memory_space<vmem>>, vector<1x8x128xbf16>
    %119 = vector.shape_cast %118 : vector<1x8x128xbf16> to vector<8x128xbf16>
    %cst_91 = arith.constant dense<0.000000e+00> : vector<8x128xf32>
    %120 = tpu.matmul %117, %119, %cst_91 {dimension_numbers = #tpu.dot_dimension_numbers<[1], [0], [0], [1], [0, 0, 1, 1], [], []>} : vector<8x8xbf16>, vector<8x128xbf16>, vector<8x128xf32> -> vector<8x128xf32>
    %121 = arith.addf %116, %120 : vector<8x128xf32>
    %c0_92 = arith.constant 0 : index
    %c0_93 = arith.constant 0 : index
    %c0_94 = arith.constant 0 : index
    %c0_95 = arith.constant 0 : index
    %122 = vector.load %arg4[%c0_92, %c0_93, %c0_94, %c0_95] : memref<1x2x9x8xbf16, #tpu.memory_space<vmem>>, vector<1x1x9x8xbf16>
    %123 = vector.shape_cast %122 : vector<1x1x9x8xbf16> to vector<9x8xbf16>
    %124 = vector.extract_strided_slice %123 {offsets = [0, 0], sizes = [8, 8], strides = [1, 1]} : vector<9x8xbf16> to vector<8x8xbf16>
    %c4_96 = arith.constant 4 : index
    %c0_97 = arith.constant 0 : index
    %c0_98 = arith.constant 0 : index
    %125 = vector.load %arg5[%c4_96, %c0_97, %c0_98] : memref<8x8x128xbf16, #tpu.memory_space<vmem>>, vector<1x8x128xbf16>
    %126 = vector.shape_cast %125 : vector<1x8x128xbf16> to vector<8x128xbf16>
    %cst_99 = arith.constant dense<0.000000e+00> : vector<8x128xf32>
    %127 = tpu.matmul %124, %126, %cst_99 {dimension_numbers = #tpu.dot_dimension_numbers<[1], [0], [0], [1], [0, 0, 1, 1], [], []>} : vector<8x8xbf16>, vector<8x128xbf16>, vector<8x128xf32> -> vector<8x128xf32>
    %128 = arith.addf %121, %127 : vector<8x128xf32>
    %129 = vector.extract_strided_slice %123 {offsets = [1, 0], sizes = [8, 8], strides = [1, 1]} : vector<9x8xbf16> to vector<8x8xbf16>
    %c5_100 = arith.constant 5 : index
    %c0_101 = arith.constant 0 : index
    %c0_102 = arith.constant 0 : index
    %130 = vector.load %arg5[%c5_100, %c0_101, %c0_102] : memref<8x8x128xbf16, #tpu.memory_space<vmem>>, vector<1x8x128xbf16>
    %131 = vector.shape_cast %130 : vector<1x8x128xbf16> to vector<8x128xbf16>
    %cst_103 = arith.constant dense<0.000000e+00> : vector<8x128xf32>
    %132 = tpu.matmul %129, %131, %cst_103 {dimension_numbers = #tpu.dot_dimension_numbers<[1], [0], [0], [1], [0, 0, 1, 1], [], []>} : vector<8x8xbf16>, vector<8x128xbf16>, vector<8x128xf32> -> vector<8x128xf32>
    %133 = arith.addf %128, %132 : vector<8x128xf32>
    %c0_104 = arith.constant 0 : index
    %c1_105 = arith.constant 1 : index
    %c0_106 = arith.constant 0 : index
    %c0_107 = arith.constant 0 : index
    %134 = vector.load %arg4[%c0_104, %c1_105, %c0_106, %c0_107] : memref<1x2x9x8xbf16, #tpu.memory_space<vmem>>, vector<1x1x9x8xbf16>
    %135 = vector.shape_cast %134 : vector<1x1x9x8xbf16> to vector<9x8xbf16>
    %136 = vector.extract_strided_slice %135 {offsets = [0, 0], sizes = [8, 8], strides = [1, 1]} : vector<9x8xbf16> to vector<8x8xbf16>
    %c6_108 = arith.constant 6 : index
    %c0_109 = arith.constant 0 : index
    %c0_110 = arith.constant 0 : index
    %137 = vector.load %arg5[%c6_108, %c0_109, %c0_110] : memref<8x8x128xbf16, #tpu.memory_space<vmem>>, vector<1x8x128xbf16>
    %138 = vector.shape_cast %137 : vector<1x8x128xbf16> to vector<8x128xbf16>
    %cst_111 = arith.constant dense<0.000000e+00> : vector<8x128xf32>
    %139 = tpu.matmul %136, %138, %cst_111 {dimension_numbers = #tpu.dot_dimension_numbers<[1], [0], [0], [1], [0, 0, 1, 1], [], []>} : vector<8x8xbf16>, vector<8x128xbf16>, vector<8x128xf32> -> vector<8x128xf32>
    %140 = arith.addf %133, %139 : vector<8x128xf32>
    %141 = vector.extract_strided_slice %135 {offsets = [1, 0], sizes = [8, 8], strides = [1, 1]} : vector<9x8xbf16> to vector<8x8xbf16>
    %c7_112 = arith.constant 7 : index
    %c0_113 = arith.constant 0 : index
    %c0_114 = arith.constant 0 : index
    %142 = vector.load %arg5[%c7_112, %c0_113, %c0_114] : memref<8x8x128xbf16, #tpu.memory_space<vmem>>, vector<1x8x128xbf16>
    %143 = vector.shape_cast %142 : vector<1x8x128xbf16> to vector<8x128xbf16>
    %cst_115 = arith.constant dense<0.000000e+00> : vector<8x128xf32>
    %144 = tpu.matmul %141, %143, %cst_115 {dimension_numbers = #tpu.dot_dimension_numbers<[1], [0], [0], [1], [0, 0, 1, 1], [], []>} : vector<8x8xbf16>, vector<8x128xbf16>, vector<8x128xf32> -> vector<8x128xf32>
    %145 = arith.addf %140, %144 : vector<8x128xf32>
    %c2_i32_116 = arith.constant 2 : i32
    %146 = arith.muli %6, %c2_i32_116 : i32
    %c1_i32_117 = arith.constant 1 : i32
    %147 = arith.addi %146, %c1_i32_117 : i32
    %c8_i32_118 = arith.constant 8 : i32
    %148 = arith.cmpi slt, %147, %c8_i32_118 : i32
    %cst_119 = arith.constant 0.000000e+00 : f32
    %149 = vector.broadcast %cst_119 : f32 to vector<8x128xf32>
    %150 = arith.select %148, %145, %149 : vector<8x128xf32>
    %151 = arith.truncf %150 : vector<8x128xf32> to vector<8x128xbf16>
    %c0_120 = arith.constant 0 : index
    %c1_121 = arith.constant 1 : index
    %c0_122 = arith.constant 0 : index
    %c0_123 = arith.constant 0 : index
    %152 = vector.load %arg6[%c0_120, %c1_121, %c0_122, %c0_123] : memref<1x2x8x128xbf16, #tpu.memory_space<vmem>>, vector<1x1x8x128xbf16>
    %153 = vector.shape_cast %152 : vector<1x1x8x128xbf16> to vector<8x128xbf16>
    %154 = vector.shape_cast %151 : vector<8x128xbf16> to vector<1x1x8x128xbf16>
    tpu.vector_store %arg6[%c0_120, %c1_121, %c0_122, %c0_123], %154 {strides = array<i32>} : memref<1x2x8x128xbf16, #tpu.memory_space<vmem>>, vector<1x1x8x128xbf16>,
    %c0_124 = arith.constant 0 : index
    %c0_125 = arith.constant 0 : index
    %c0_126 = arith.constant 0 : index
    %155 = vector.load %arg7[%c0_124, %c0_125, %c0_126] : memref<1x1x128xf32, #tpu.memory_space<vmem>>, vector<1x1x128xf32>
    %156 = vector.shape_cast %155 : vector<1x1x128xf32> to vector<1x128xf32>
    %cst_127 = arith.constant dense<0.000000e+00> : vector<128xf32>
    %157 = vector.multi_reduction <add>, %150, %cst_127 [0] : vector<8x128xf32> to vector<128xf32>
    %158 = vector.shape_cast %157 : vector<128xf32> to vector<1x128xf32>
    %159 = arith.addf %156, %158 : vector<1x128xf32>
    %c0_128 = arith.constant 0 : index
    %c0_129 = arith.constant 0 : index
    %c0_130 = arith.constant 0 : index
    %160 = vector.load %arg7[%c0_128, %c0_129, %c0_130] : memref<1x1x128xf32, #tpu.memory_space<vmem>>, vector<1x1x128xf32>
    %161 = vector.shape_cast %160 : vector<1x1x128xf32> to vector<1x128xf32>
    %162 = vector.shape_cast %159 : vector<1x128xf32> to vector<1x1x128xf32>
    tpu.vector_store %arg7[%c0_128, %c0_129, %c0_130], %162 {strides = array<i32>} : memref<1x1x128xf32, #tpu.memory_space<vmem>>, vector<1x1x128xf32>,
    %c0_131 = arith.constant 0 : index
    %c0_132 = arith.constant 0 : index
    %c0_133 = arith.constant 0 : index
    %163 = vector.load %arg8[%c0_131, %c0_132, %c0_133] : memref<1x1x128xf32, #tpu.memory_space<vmem>>, vector<1x1x128xf32>
    %164 = vector.shape_cast %163 : vector<1x1x128xf32> to vector<1x128xf32>
    %165 = arith.mulf %150, %150 : vector<8x128xf32>
    %cst_134 = arith.constant dense<0.000000e+00> : vector<128xf32>
    %166 = vector.multi_reduction <add>, %165, %cst_134 [0] : vector<8x128xf32> to vector<128xf32>
    %167 = vector.shape_cast %166 : vector<128xf32> to vector<1x128xf32>
    %168 = arith.addf %164, %167 : vector<1x128xf32>
    %c0_135 = arith.constant 0 : index
    %c0_136 = arith.constant 0 : index
    %c0_137 = arith.constant 0 : index
    %169 = vector.load %arg8[%c0_135, %c0_136, %c0_137] : memref<1x1x128xf32, #tpu.memory_space<vmem>>, vector<1x1x128xf32>
    %170 = vector.shape_cast %169 : vector<1x1x128xf32> to vector<1x128xf32>
    %171 = vector.shape_cast %168 : vector<1x128xf32> to vector<1x1x128xf32>
    tpu.vector_store %arg8[%c0_135, %c0_136, %c0_137], %171 {strides = array<i32>} : memref<1x1x128xf32, #tpu.memory_space<vmem>>, vector<1x1x128xf32>,
    return
  }
  func.func @transform_0(%arg0: i32, %arg1: i32, %arg2: i32) -> (i32, i32, i32, i32) {
    %c2_i32 = arith.constant 2 : i32
    %0 = arith.muli %arg0, %c2_i32 : i32
    %1 = arith.addi %0, %arg2 : i32
    %c0_i32 = arith.constant 0 : i32
    %c0_i32_0 = arith.constant 0 : i32
    %c0_i32_1 = arith.constant 0 : i32
    return %arg1, %1, %c0_i32, %c0_i32_0 : i32, i32, i32, i32
  }
  func.func @transform_1(%arg0: i32, %arg1: i32, %arg2: i32) -> (i32, i32, i32, i32) {
    %c2_i32 = arith.constant 2 : i32
    %0 = arith.muli %arg0, %c2_i32 : i32
    %1 = arith.addi %0, %arg2 : i32
    %c1_i32 = arith.constant 1 : i32
    %2 = arith.addi %1, %c1_i32 : i32
    %c2_i32_0 = arith.constant 2 : i32
    %3 = arith.muli %2, %c2_i32_0 : i32
    %c0_i32 = arith.constant 0 : i32
    %c0_i32_1 = arith.constant 0 : i32
    %c0_i32_2 = arith.constant 0 : i32
    return %arg1, %3, %c0_i32, %c0_i32_1 : i32, i32, i32, i32
  }
  func.func @transform_2(%arg0: i32, %arg1: i32, %arg2: i32) -> (i32, i32, i32) {
    %c0_i32 = arith.constant 0 : i32
    %c0_i32_0 = arith.constant 0 : i32
    %c0_i32_1 = arith.constant 0 : i32
    %c0_i32_2 = arith.constant 0 : i32
    return %c0_i32, %c0_i32_0, %c0_i32_1 : i32, i32, i32
  }
  func.func @transform_3(%arg0: i32, %arg1: i32, %arg2: i32) -> (i32, i32, i32, i32) {
    %c2_i32 = arith.constant 2 : i32
    %0 = arith.muli %arg0, %c2_i32 : i32
    %1 = arith.addi %0, %arg2 : i32
    %c0_i32 = arith.constant 0 : i32
    %c0_i32_0 = arith.constant 0 : i32
    %c0_i32_1 = arith.constant 0 : i32
    return %arg1, %1, %c0_i32, %c0_i32_0 : i32, i32, i32, i32
  }
  func.func @transform_4(%arg0: i32, %arg1: i32, %arg2: i32) -> (i32, i32, i32) {
    %c0_i32 = arith.constant 0 : i32
    %c0_i32_0 = arith.constant 0 : i32
    %c0_i32_1 = arith.constant 0 : i32
    return %arg0, %c0_i32, %c0_i32_0 : i32, i32, i32
  }
  func.func @transform_5(%arg0: i32, %arg1: i32, %arg2: i32) -> (i32, i32, i32) {
    %c0_i32 = arith.constant 0 : i32
    %c0_i32_0 = arith.constant 0 : i32
    %c0_i32_1 = arith.constant 0 : i32
    return %arg0, %c0_i32, %c0_i32_0 : i32, i32, i32
  }
}

module attributes {stable_mosaic.version = 11 : i64} {
  func.func @_norm_lrelu_kernel(%arg0: i32, %arg1: i32, %arg2: memref<1x8x8x128xbf16, #tpu.memory_space<vmem>>, %arg3: memref<1x128xf32, #tpu.memory_space<vmem>>, %arg4: memref<1x128xf32, #tpu.memory_space<vmem>>, %arg5: memref<1x8x8x128xbf16, #tpu.memory_space<vmem>>) attributes {dimension_semantics = [#tpu.dimension_semantics<parallel>, #tpu.dimension_semantics<parallel>], iteration_bounds = array<i64: 2, 1>, scalar_prefetch = 0 : i64, scratch_operands = 0 : i64, tpu.core_type = #tpu.core_type<tc>, window_params = [{transform_indices = @transform_0, window_bounds = array<i64: 1, 8, 8, 128>}, {pipeline_mode = #tpu.pipeline_mode<synchronous>, transform_indices = @transform_1, window_bounds = array<i64: 1, 128>}, {pipeline_mode = #tpu.pipeline_mode<synchronous>, transform_indices = @transform_2, window_bounds = array<i64: 1, 128>}, {transform_indices = @transform_3, window_bounds = array<i64: 1, 8, 8, 128>}]} {
    %c0 = arith.constant 0 : index
    %c0_0 = arith.constant 0 : index
    %c0_1 = arith.constant 0 : index
    %c0_2 = arith.constant 0 : index
    %0 = vector.load %arg2[%c0, %c0_0, %c0_1, %c0_2] : memref<1x8x8x128xbf16, #tpu.memory_space<vmem>>, vector<1x8x8x128xbf16>
    %1 = arith.extf %0 : vector<1x8x8x128xbf16> to vector<1x8x8x128xf32>
    %c0_3 = arith.constant 0 : index
    %c0_4 = arith.constant 0 : index
    %2 = vector.load %arg3[%c0_3, %c0_4] : memref<1x128xf32, #tpu.memory_space<vmem>>, vector<1x128xf32>
    %3 = vector.shape_cast %2 : vector<1x128xf32> to vector<1x1x1x128xf32>
    %4 = vector.broadcast %3 : vector<1x1x1x128xf32> to vector<1x8x8x128xf32>
    %5 = arith.mulf %1, %4 : vector<1x8x8x128xf32>
    %c0_5 = arith.constant 0 : index
    %c0_6 = arith.constant 0 : index
    %6 = vector.load %arg4[%c0_5, %c0_6] : memref<1x128xf32, #tpu.memory_space<vmem>>, vector<1x128xf32>
    %7 = vector.shape_cast %6 : vector<1x128xf32> to vector<1x1x1x128xf32>
    %8 = vector.broadcast %7 : vector<1x1x1x128xf32> to vector<1x8x8x128xf32>
    %9 = arith.addf %5, %8 : vector<1x8x8x128xf32>
    %cst = arith.constant 0.000000e+00 : f32
    %10 = vector.broadcast %cst : f32 to vector<1x8x8x128xf32>
    %11 = arith.cmpf ogt, %9, %10 : vector<1x8x8x128xf32>
    %cst_7 = arith.constant 2.000000e-01 : f32
    %12 = vector.broadcast %cst_7 : f32 to vector<1x8x8x128xf32>
    %13 = arith.mulf %12, %9 : vector<1x8x8x128xf32>
    %14 = arith.select %11, %9, %13 : vector<1x8x8x128xi1>, vector<1x8x8x128xf32>
    %15 = arith.truncf %14 : vector<1x8x8x128xf32> to vector<1x8x8x128xbf16>
    %c0_8 = arith.constant 0 : index
    %c0_9 = arith.constant 0 : index
    %c0_10 = arith.constant 0 : index
    %c0_11 = arith.constant 0 : index
    %16 = vector.load %arg5[%c0_8, %c0_9, %c0_10, %c0_11] : memref<1x8x8x128xbf16, #tpu.memory_space<vmem>>, vector<1x8x8x128xbf16>
    tpu.vector_store %arg5[%c0_8, %c0_9, %c0_10, %c0_11], %15 {strides = array<i32>} : memref<1x8x8x128xbf16, #tpu.memory_space<vmem>>, vector<1x8x8x128xbf16>,
    return
  }
  func.func @transform_0(%arg0: i32, %arg1: i32) -> (i32, i32, i32, i32) {
    %c0_i32 = arith.constant 0 : i32
    %c0_i32_0 = arith.constant 0 : i32
    %c0_i32_1 = arith.constant 0 : i32
    return %arg0, %arg1, %c0_i32, %c0_i32_0 : i32, i32, i32, i32
  }
  func.func @transform_1(%arg0: i32, %arg1: i32) -> (i32, i32) {
    %c0_i32 = arith.constant 0 : i32
    %c0_i32_0 = arith.constant 0 : i32
    %c0_i32_1 = arith.constant 0 : i32
    return %c0_i32, %c0_i32_0 : i32, i32
  }
  func.func @transform_2(%arg0: i32, %arg1: i32) -> (i32, i32) {
    %c0_i32 = arith.constant 0 : i32
    %c0_i32_0 = arith.constant 0 : i32
    %c0_i32_1 = arith.constant 0 : i32
    return %c0_i32, %c0_i32_0 : i32, i32
  }
  func.func @transform_3(%arg0: i32, %arg1: i32) -> (i32, i32, i32, i32) {
    %c0_i32 = arith.constant 0 : i32
    %c0_i32_0 = arith.constant 0 : i32
    %c0_i32_1 = arith.constant 0 : i32
    return %arg0, %arg1, %c0_i32, %c0_i32_0 : i32, i32, i32, i32
  }
}

</mosaic_0001>

<llo_original>
// kernel: discriminator_block.3
$region0: #{discriminator_block.3}
  #allocation0 [shape = 'u32[]', space=smem, size = 0x4, offset = 0x4, fixed_abs, tag = 'smem constant byte address 0x4 - core index']
  #allocation1 [shape = 'u32[72,128]{1,0:T(1,128)}', space=vmem, size = 0x9000, scoped, tag = 'internal scratch']
  %s0 = inlined_call_operand.vmem [shape: bf16[2,8,8,128], index: 0, kind: input, shape index: {}, may-alias: {0,3}]
  %s1 = inlined_call_operand.vmem [shape: f32[1,128], index: 1, kind: input, shape index: {}]
  %s2 = inlined_call_operand.vmem [shape: f32[1,128], index: 2, kind: input, shape index: {}]
  %s3 = inlined_call_operand.vmem [shape: bf16[2,8,8,128], index: 3, kind: output, shape index: {}, may-alias: {0,3}]
  %s4 = sld [smem:[#allocation0]]
  $region45: #{discriminator_block.3} parent=0
    _
  %s6 = ssub.s32 1, %s4
  %s7 = scalar_select 0, %s6, %s4
  loop: start=0, step=1, limit=4
  $region2: #{discriminator_block.3} parent=0 // loop_pre_header
    _
  $region3: #{discriminator_block.3} parent=0 // loop_header
    %s9 = sphi 0, %s13
    %p10 = scmp.ge.s32.totalorder %s9, 4
    %s16 = sphi 0, %s28
    %s17 = sphi 0, %s24
    %s18 = sphi 0, %s16
    %s19 = sphi 0, %s17
    %s20 = sphi 0, %s18
    %s21 = sphi 0, %s19
    %s33 = sphi 0, %s35
    %s36 = sphi 0, %s33
    %s37 = sphi 0, %s36
    %s53 = sphi 0, %s37
    %s57 = sphi 0, %s57
    %s59 = sphi 0, %s57
    %s60 = sphi 0, %s59
    %s74 = sphi 0, %s60
    %s78 = sphi 0, %s78
    %s80 = sphi 0, %s78
    %s81 = sphi 0, %s80
    %s95 = sphi 0, %s81
    %s103 = sphi 0, %s105
    %s106 = sphi 0, %s103
    %s107 = sphi 0, %s106
    %s123 = sphi 0, %s107
  $region4: #{discriminator_block.3} parent=0 // loop_header_branch
    %12 = sbr.rel (%p10) target = $region8
  $region5: #{discriminator_block.3} parent=0 // loop_body
    %s14 = ssub.s32 %s9, 1
    %s15 = ssub.s32 %s9, 2
    %s22 = sadd.s32 1, %s17
    %p23 = scmp.ge.s32.totalorder %s22, 1
    %s24 = scalar_select %p23, 0, %s22
    %s25 = sadd.s32 1, %s16
    %s26 = scalar_select %p23, %s25, %s16
    %p27 = scmp.ge.s32.totalorder %s26, 2
    %s28 = scalar_select %p27, 0, %s26
    %s29 = ssub.s32 %s16, %s28
    %s30 = ssub.s32 %s17, %s24
    %s31 = sor.u32 %s29, %s30
    %p32 = scmp.eq.s32.totalorder %s31, 0
    %s34 = sadd.s32 %s33, 1
    %s35 = scalar_select %p32, %s33, %s34
    %p38 = pneg %p32
    %p39 = scmp.eq.s32.totalorder %s9, 1
    %p40 = por %p38, %p39
    %p41 = scmp.ne.s32.totalorder %s33, %s36
    %p42 = scmp.eq.s32.totalorder %s9, 0
    %p43 = por %p41, %p42
    %p44 = scmp.ne.s32.totalorder %s33, %s36
    %p45 = scmp.eq.s32.totalorder %s14, 1
    %p46 = por %p44, %p45
    %p47 = scmp.ne.s32.totalorder %s36, %s37
    %p48 = scmp.eq.s32.totalorder %s14, 0
    %p49 = por %p47, %p48
    %p50 = scmp.ne.s32.totalorder %s36, %s37
    %p51 = scmp.eq.s32.totalorder %s15, 1
    %p52 = por %p50, %p51
    %p54 = scmp.ne.s32.totalorder %s37, %s53
    %p55 = scmp.eq.s32.totalorder %s15, 0
    %p56 = por %p54, %p55
    %s58 = sadd.s32 %s57, 1
    %p61 = scmp.eq.s32.totalorder %s9, 1
    %p62 = scmp.ne.s32.totalorder %s57, %s59
    %p63 = scmp.eq.s32.totalorder %s9, 0
    %p64 = por %p62, %p63
    %p65 = scmp.ne.s32.totalorder %s57, %s59
    %p66 = scmp.eq.s32.totalorder %s14, 1
    %p67 = por %p65, %p66
    %p68 = scmp.ne.s32.totalorder %s59, %s60
    %p69 = scmp.eq.s32.totalorder %s14, 0
    %p70 = por %p68, %p69
    %p71 = scmp.ne.s32.totalorder %s59, %s60
    %p72 = scmp.eq.s32.totalorder %s15, 1
    %p73 = por %p71, %p72
    %p75 = scmp.ne.s32.totalorder %s60, %s74
    %p76 = scmp.eq.s32.totalorder %s15, 0
    %p77 = por %p75, %p76
    %s79 = sadd.s32 %s78, 1
    %p82 = scmp.eq.s32.totalorder %s9, 1
    %p83 = scmp.ne.s32.totalorder %s78, %s80
    %p84 = scmp.eq.s32.totalorder %s9, 0
    %p85 = por %p83, %p84
    %p86 = scmp.ne.s32.totalorder %s78, %s80
    %p87 = scmp.eq.s32.totalorder %s14, 1
    %p88 = por %p86, %p87
    %p89 = scmp.ne.s32.totalorder %s80, %s81
    %p90 = scmp.eq.s32.totalorder %s14, 0
    %p91 = por %p89, %p90
    %p92 = scmp.ne.s32.totalorder %s80, %s81
    %p93 = scmp.eq.s32.totalorder %s15, 1
    %p94 = por %p92, %p93
    %p96 = scmp.ne.s32.totalorder %s81, %s95
    %p97 = scmp.eq.s32.totalorder %s15, 0
    %p98 = por %p96, %p97
    %s99 = ssub.s32 %s16, %s28
    %s100 = ssub.s32 %s17, %s24
    %s101 = sor.u32 %s99, %s100
    %p102 = scmp.eq.s32.totalorder %s101, 0
    %s104 = sadd.s32 %s103, 1
    %s105 = scalar_select %p102, %s103, %s104
    %p108 = pneg %p102
    %p109 = scmp.eq.s32.totalorder %s9, 1
    %p110 = por %p108, %p109
    %p111 = scmp.ne.s32.totalorder %s103, %s106
    %p112 = scmp.eq.s32.totalorder %s9, 0
    %p113 = por %p111, %p112
    %p114 = scmp.ne.s32.totalorder %s103, %s106
    %p115 = scmp.eq.s32.totalorder %s14, 1
    %p116 = por %p114, %p115
    %p117 = scmp.ne.s32.totalorder %s106, %s107
    %p118 = scmp.eq.s32.totalorder %s14, 0
    %p119 = por %p117, %p118
    %p120 = scmp.ne.s32.totalorder %s106, %s107
    %p121 = scmp.eq.s32.totalorder %s15, 1
    %p122 = por %p120, %p121
    %p124 = scmp.ne.s32.totalorder %s107, %s123
    %p125 = scmp.eq.s32.totalorder %s15, 0
    %p126 = por %p124, %p125
    %p127 = scmp.le.s32.totalorder 1, %s9
    %p128 = scmp.lt.s32.totalorder %s9, 3
    %p129 = pnand %p127, %p128
    %p130 = pneg %p129
    // Predicated region
    $region9: #{discriminator_block.3} parent=5 // pred_check
      _
    $region10: #{discriminator_block.3} parent=5 // pred_check_branch
      %132 = sbr.rel (%p129) target = $region12
    $region11: #{discriminator_block.3} parent=5 // pred_region
      %s133 = ssub.s32 %s9, 1
      // Predicated region
      $region13: #{discriminator_block.3} parent=11 // pred_check
        %p134 = pneg %p70
      $region14: #{discriminator_block.3} parent=11 // pred_check_branch
        %136 = sbr.rel (%p134) target = $region16
      $region15: #{discriminator_block.3} parent=11 // pred_region
        _
      $region16: #{discriminator_block.3} parent=11 // pred_fallthru
        _
      // Predicated region
      $region17: #{discriminator_block.3} parent=11 // pred_check
        %p137 = pneg %p91
      $region18: #{discriminator_block.3} parent=11 // pred_check_branch
        %139 = sbr.rel (%p137) target = $region20
      $region19: #{discriminator_block.3} parent=11 // pred_region
        _
      $region20: #{discriminator_block.3} parent=11 // pred_fallthru
        _
    $region12: #{discriminator_block.3} parent=5 // pred_fallthru
      _
    %p140 = scmp.lt.s32.totalorder %s9, 2
    // Predicated region
    $region21: #{discriminator_block.3} parent=5 // pred_check
      %p141 = pneg %p140
    $region22: #{discriminator_block.3} parent=5 // pred_check_branch
      %143 = sbr.rel (%p141) target = $region24
    $region23: #{discriminator_block.3} parent=5 // pred_region
      // Predicated region
      $region25: #{discriminator_block.3} parent=23 // pred_check
        %p144 = pneg %p43
      $region26: #{discriminator_block.3} parent=23 // pred_check_branch
        %146 = sbr.rel (%p144) target = $region28
      $region27: #{discriminator_block.3} parent=23 // pred_region
        %s147 = smul.u32 8, %s17
        %p148 = scmp.lt.s32.totalorder %s16, 1
        %s149 = scalar_select %p148, %s16, 1
        %p150 = scmp.lt.s32.totalorder %s147, 7
        %s151 = scalar_select %p150, %s147, 7
        %s152 = smul.addr %s149, 8
        %s153 = sadd.s32 %s151, %s152
        %s154 = smul.addr %s153, 4
        %s155 = scalar_lea.vmem %s0, %s154
        %s156 = smul.u32 8, %s17
      $region28: #{discriminator_block.3} parent=23 // pred_fallthru
        _
    $region24: #{discriminator_block.3} parent=5 // pred_fallthru
      _
    %p157 = scmp.le.s32.totalorder 1, %s9
    %p158 = scmp.lt.s32.totalorder %s9, 3
    %p159 = pnand %p157, %p158
    %p160 = pneg %p159
    // Predicated region
    $region29: #{discriminator_block.3} parent=5 // pred_check
      _
    $region30: #{discriminator_block.3} parent=5 // pred_check_branch
      %162 = sbr.rel (%p159) target = $region32
    $region31: #{discriminator_block.3} parent=5 // pred_region
      %s163 = ssub.s32 %s9, 1
      %s164 = smul.u32 8, %s19
      %p165 = scmp.lt.s32.totalorder %s18, 1
      %s166 = scalar_select %p165, %s18, 1
      %p167 = scmp.lt.s32.totalorder %s164, 7
      %s168 = scalar_select %p167, %s164, 7
      %s169 = smul.addr %s166, 8
      %s170 = sadd.s32 %s168, %s169
      %s171 = smul.addr %s170, 4
      %s172 = scalar_lea.vmem %s0, %s171
      %p173 = pneg %p49
      %p174 = pneg %p46
      %p175 = pneg %p70
      %p176 = pneg %p67
      %p177 = pneg %p91
      %p178 = pneg %p88
      %p179 = pneg %p119
      %p180 = pneg %p116
      %s181 = smul.u32 8, %s19
      %p182 = scmp.lt.s32.totalorder %s18, 1
      %s183 = scalar_select %p182, %s18, 1
      %p184 = scmp.lt.s32.totalorder %s181, 7
      %s185 = scalar_select %p184, %s181, 7
      %s186 = smul.addr %s183, 8
      %s187 = sadd.s32 %s185, %s186
      %s188 = smul.addr %s187, 4
      %s189 = scalar_lea.vmem %s3, %s188
      %s190 = smul.u32 8, %s19
      %p191 = scmp.lt.s32.totalorder %s18, 1
      %s192 = scalar_select %p191, %s18, 1
      %p193 = scmp.lt.s32.totalorder %s190, 7
      %s194 = scalar_select %p193, %s190, 7
      %s195 = smul.addr %s192, 8
      %s196 = sadd.s32 %s194, %s195
      %s197 = smul.addr %s196, 4
      %s198 = scalar_lea.vmem %s0, %s197
      %s199 = smul.u32 8, %s19
      %s200 = smul.u32 8, %s19
      %p201 = scmp.lt.s32.totalorder %s18, 1
      %s202 = scalar_select %p201, %s18, 1
      %p203 = scmp.lt.s32.totalorder %s200, 7
      %s204 = scalar_select %p203, %s200, 7
      %s205 = smul.addr %s202, 8
      %s206 = sadd.s32 %s204, %s205
      %s207 = smul.addr %s206, 4
      %s208 = scalar_lea.vmem %s3, %s207
      %s209 = smul.u32 8, %s19
      %v210 = vld [vmem:[%s198] sm:$0xf]
      %v211 = vld [vmem:[%s198 + $0x4] sm:$0xf]
      %v212 = vld [vmem:[%s198 + $0x8] sm:$0xf]
      %v213 = vld [vmem:[%s198 + $0xc] sm:$0xf]
      %v214 = vld [vmem:[%s198 + $0x10] sm:$0xf]
      %v215 = vld [vmem:[%s198 + $0x14] sm:$0xf]
      %v216 = vld [vmem:[%s198 + $0x18] sm:$0xf]
      %v217 = vld [vmem:[%s198 + $0x1c] sm:$0xf]
      %v218 = vunpack.c.l.bf16 %v210
      %v219 = vunpack.c.l.bf16 %v211
      %v220 = vunpack.c.l.bf16 %v212
      %v221 = vunpack.c.l.bf16 %v213
      %v222 = vunpack.c.l.bf16 %v214
      %v223 = vunpack.c.l.bf16 %v215
      %v224 = vunpack.c.l.bf16 %v216
      %v225 = vunpack.c.l.bf16 %v217
      %v226 = vld [vmem:[%s1] sm:$0x1]
      %v228 = vperm.slane %v226, 0
      %v230 = vmul.f32 %v218, %v228
      %v231 = vmul.f32 %v219, %v228
      %v232 = vmul.f32 %v220, %v228
      %v233 = vmul.f32 %v221, %v228
      %v234 = vmul.f32 %v222, %v228
      %v235 = vmul.f32 %v223, %v228
      %v236 = vmul.f32 %v224, %v228
      %v237 = vmul.f32 %v225, %v228
      %v238 = vld [vmem:[%s2] sm:$0x1]
      %v240 = vperm.slane %v238, 0
      %v242 = vadd.f32 %v230, %v240
      %v243 = vadd.f32 %v231, %v240
      %v244 = vadd.f32 %v232, %v240
      %v245 = vadd.f32 %v233, %v240
      %v246 = vadd.f32 %v234, %v240
      %v247 = vadd.f32 %v235, %v240
      %v248 = vadd.f32 %v236, %v240
      %v249 = vadd.f32 %v237, %v240
      %vm250 = vcmp.gt.f32.partialorder %v242, 0.0
      %vm251 = vcmp.gt.f32.partialorder %v243, 0.0
      %vm252 = vcmp.gt.f32.partialorder %v244, 0.0
      %vm253 = vcmp.gt.f32.partialorder %v245, 0.0
      %vm254 = vcmp.gt.f32.partialorder %v246, 0.0
      %vm255 = vcmp.gt.f32.partialorder %v247, 0.0
      %vm256 = vcmp.gt.f32.partialorder %v248, 0.0
      %vm257 = vcmp.gt.f32.partialorder %v249, 0.0
      %v258 = vmul.f32 %v242, 0.2
      %v259 = vmul.f32 %v243, 0.2
      %v260 = vmul.f32 %v244, 0.2
      %v261 = vmul.f32 %v245, 0.2
      %v262 = vmul.f32 %v246, 0.2
      %v263 = vmul.f32 %v247, 0.2
      %v264 = vmul.f32 %v248, 0.2
      %v265 = vmul.f32 %v249, 0.2
      %v266 = vsel %vm250, %v242, %v258
      %v267 = vsel %vm251, %v243, %v259
      %v268 = vsel %vm252, %v244, %v260
      %v269 = vsel %vm253, %v245, %v261
      %v270 = vsel %vm254, %v246, %v262
      %v271 = vsel %vm255, %v247, %v263
      %v272 = vsel %vm256, %v248, %v264
      %v273 = vsel %vm257, %v249, %v265
      %v274 = vpack.c.bf16 %v266, %v266
      %v275 = vpack.c.bf16 %v267, %v267
      %v276 = vpack.c.bf16 %v268, %v268
      %v277 = vpack.c.bf16 %v269, %v269
      %v278 = vpack.c.bf16 %v270, %v270
      %v279 = vpack.c.bf16 %v271, %v271
      %v280 = vpack.c.bf16 %v272, %v272
      %v281 = vpack.c.bf16 %v273, %v273
      %282 = vst [vmem:[%s208] sm:$0xf] %v274
      %283 = vst [vmem:[%s208 + $0x4] sm:$0xf] %v275
      %284 = vst [vmem:[%s208 + $0x8] sm:$0xf] %v276
      %285 = vst [vmem:[%s208 + $0xc] sm:$0xf] %v277
      %286 = vst [vmem:[%s208 + $0x10] sm:$0xf] %v278
      %287 = vst [vmem:[%s208 + $0x14] sm:$0xf] %v279
      %288 = vst [vmem:[%s208 + $0x18] sm:$0xf] %v280
      %289 = vst [vmem:[%s208 + $0x1c] sm:$0xf] %v281
      %s290 = smul.u32 8, %s19
      %p291 = scmp.lt.s32.totalorder %s18, 1
      %s292 = scalar_select %p291, %s18, 1
      %p293 = scmp.lt.s32.totalorder %s290, 7
      %s294 = scalar_select %p293, %s290, 7
      %s295 = smul.addr %s292, 8
      %s296 = sadd.s32 %s294, %s295
      %s297 = smul.addr %s296, 4
      %s298 = scalar_lea.vmem %s3, %s297
      // Predicated region
      $region33: #{discriminator_block.3} parent=31 // pred_check
        %p299 = pneg %p116
      $region34: #{discriminator_block.3} parent=31 // pred_check_branch
        %301 = sbr.rel (%p299) target = $region36
      $region35: #{discriminator_block.3} parent=31 // pred_region
        %s302 = smul.u32 8, %s19
      $region36: #{discriminator_block.3} parent=31 // pred_fallthru
        _
    $region32: #{discriminator_block.3} parent=5 // pred_fallthru
      _
    %p303 = scmp.le.s32.totalorder 2, %s9
    // Predicated region
    $region37: #{discriminator_block.3} parent=5 // pred_check
      %p304 = pneg %p303
    $region38: #{discriminator_block.3} parent=5 // pred_check_branch
      %306 = sbr.rel (%p304) target = $region40
    $region39: #{discriminator_block.3} parent=5 // pred_region
      %s307 = ssub.s32 %s9, 2
      // Predicated region
      $region41: #{discriminator_block.3} parent=39 // pred_check
        %p308 = pneg %p122
      $region42: #{discriminator_block.3} parent=39 // pred_check_branch
        %310 = sbr.rel (%p308) target = $region44
      $region43: #{discriminator_block.3} parent=39 // pred_region
        %s311 = smul.u32 8, %s21
        %p312 = scmp.lt.s32.totalorder %s20, 1
        %s313 = scalar_select %p312, %s20, 1
        %p314 = scmp.lt.s32.totalorder %s311, 7
        %s315 = scalar_select %p314, %s311, 7
        %s316 = smul.addr %s313, 8
        %s317 = sadd.s32 %s315, %s316
        %s318 = smul.addr %s317, 4
        %s319 = scalar_lea.vmem %s3, %s318
      $region44: #{discriminator_block.3} parent=39 // pred_fallthru
        _
    $region40: #{discriminator_block.3} parent=5 // pred_fallthru
      _
  $region6: #{discriminator_block.3} parent=0 // loop_footer
    %s13 = sadd.s32 1, %s9
  $region7: #{discriminator_block.3} parent=0 // loop_footer_branch
    %8 = sbr.rel target = $region3
  $region8: #{discriminator_block.3} parent=0 // loop_exit
    _

// kernel: discriminator_block.2
$region0: #{discriminator_block.2}
  #allocation0 [shape = 'u32[]', space=smem, size = 0x4, offset = 0x4, fixed_abs, tag = 'smem constant byte address 0x4 - core index']
  #allocation1 [shape = 'u32[72,128]{1,0:T(1,128)}', space=vmem, size = 0x9000, scoped, tag = 'internal scratch']
  %s0 = inlined_call_operand.vmem [shape: bf16[2,18,9,8], index: 0, kind: input, shape index: {}, may-alias: {0,1}]
  %s1 = inlined_call_operand.vmem [shape: bf16[2,18,9,8], index: 1, kind: input, shape index: {}, may-alias: {0,1}]
  %s2 = inlined_call_operand.vmem [shape: bf16[8,8,128], index: 2, kind: input, shape index: {}]
  %s3 = inlined_call_operand.vmem [shape: bf16[2,8,8,128], index: 3, kind: output, shape index: {0}]
  %s4 = inlined_call_operand.vmem [shape: f32[2,1,128], index: 4, kind: output, shape index: {1}]
  %s5 = inlined_call_operand.vmem [shape: f32[2,1,128], index: 5, kind: output, shape index: {2}]
  %6 = xla_tuple %s3, %s4, %s5
  %s7 = sld [smem:[#allocation0]]
  $region65: #{discriminator_block.2} parent=0
    _
  %s9 = ssub.s32 1, %s7
  %s10 = scalar_select 0, %s9, %s7
  loop: start=0, step=1, limit=10
  $region2: #{discriminator_block.2} parent=0 // loop_pre_header
    _
  $region3: #{discriminator_block.2} parent=0 // loop_header
    %s12 = sphi 0, %s16
    %p13 = scmp.ge.s32.totalorder %s12, 10
    %s19 = sphi 0, %s38
    %s20 = sphi 0, %s34
    %s21 = sphi 0, %s30
    %s22 = sphi 0, %s19
    %s23 = sphi 0, %s20
    %s24 = sphi 0, %s21
    %s25 = sphi 0, %s22
    %s26 = sphi 0, %s23
    %s27 = sphi 0, %s24
    %s47 = sphi 0, %s49
    %s50 = sphi 0, %s47
    %s51 = sphi 0, %s50
    %s67 = sphi 0, %s51
    %s83 = sphi 0, %s85
    %s86 = sphi 0, %s83
    %s87 = sphi 0, %s86
    %s103 = sphi 0, %s87
    %s107 = sphi 0, %s107
    %s109 = sphi 0, %s107
    %s110 = sphi 0, %s109
    %s124 = sphi 0, %s110
    %s136 = sphi 0, %s138
    %s139 = sphi 0, %s136
    %s140 = sphi 0, %s139
    %s156 = sphi 0, %s140
    %s162 = sphi 0, %s164
    %s165 = sphi 0, %s162
    %s166 = sphi 0, %s165
    %s182 = sphi 0, %s166
    %s188 = sphi 0, %s190
    %s191 = sphi 0, %s188
    %s192 = sphi 0, %s191
    %s208 = sphi 0, %s192
  $region4: #{discriminator_block.2} parent=0 // loop_header_branch
    %15 = sbr.rel (%p13) target = $region8
  $region5: #{discriminator_block.2} parent=0 // loop_body
    %s17 = ssub.s32 %s12, 1
    %s18 = ssub.s32 %s12, 2
    %s28 = sadd.s32 1, %s21
    %p29 = scmp.ge.s32.totalorder %s28, 2
    %s30 = scalar_select %p29, 0, %s28
    %s31 = sadd.s32 1, %s20
    %s32 = scalar_select %p29, %s31, %s20
    %p33 = scmp.ge.s32.totalorder %s32, 2
    %s34 = scalar_select %p33, 0, %s32
    %s35 = sadd.s32 1, %s19
    %s36 = scalar_select %p33, %s35, %s19
    %p37 = scmp.ge.s32.totalorder %s36, 2
    %s38 = scalar_select %p37, 0, %s36
    %s39 = smul.u32 %s19, 2
    %s40 = sadd.s32 %s39, %s21
    %s41 = smul.u32 %s38, 2
    %s42 = sadd.s32 %s41, %s30
    %s43 = ssub.s32 %s20, %s34
    %s44 = ssub.s32 %s40, %s42
    %s45 = sor.u32 %s43, %s44
    %p46 = scmp.eq.s32.totalorder %s45, 0
    %s48 = sadd.s32 %s47, 1
    %s49 = scalar_select %p46, %s47, %s48
    %p52 = pneg %p46
    %p53 = scmp.eq.s32.totalorder %s12, 7
    %p54 = por %p52, %p53
    %p55 = scmp.ne.s32.totalorder %s47, %s50
    %p56 = scmp.eq.s32.totalorder %s12, 0
    %p57 = por %p55, %p56
    %p58 = scmp.ne.s32.totalorder %s47, %s50
    %p59 = scmp.eq.s32.totalorder %s17, 7
    %p60 = por %p58, %p59
    %p61 = scmp.ne.s32.totalorder %s50, %s51
    %p62 = scmp.eq.s32.totalorder %s17, 0
    %p63 = por %p61, %p62
    %p64 = scmp.ne.s32.totalorder %s50, %s51
    %p65 = scmp.eq.s32.totalorder %s18, 7
    %p66 = por %p64, %p65
    %p68 = scmp.ne.s32.totalorder %s51, %s67
    %p69 = scmp.eq.s32.totalorder %s18, 0
    %p70 = por %p68, %p69
    %s71 = smul.u32 %s19, 2
    %s72 = sadd.s32 %s71, %s21
    %s73 = sadd.s32 %s72, 1
    %s74 = smul.u32 %s73, 2
    %s75 = smul.u32 %s38, 2
    %s76 = sadd.s32 %s75, %s30
    %s77 = sadd.s32 %s76, 1
    %s78 = smul.u32 %s77, 2
    %s79 = ssub.s32 %s20, %s34
    %s80 = ssub.s32 %s74, %s78
    %s81 = sor.u32 %s79, %s80
    %p82 = scmp.eq.s32.totalorder %s81, 0
    %s84 = sadd.s32 %s83, 1
    %s85 = scalar_select %p82, %s83, %s84
    %p88 = pneg %p82
    %p89 = scmp.eq.s32.totalorder %s12, 7
    %p90 = por %p88, %p89
    %p91 = scmp.ne.s32.totalorder %s83, %s86
    %p92 = scmp.eq.s32.totalorder %s12, 0
    %p93 = por %p91, %p92
    %p94 = scmp.ne.s32.totalorder %s83, %s86
    %p95 = scmp.eq.s32.totalorder %s17, 7
    %p96 = por %p94, %p95
    %p97 = scmp.ne.s32.totalorder %s86, %s87
    %p98 = scmp.eq.s32.totalorder %s17, 0
    %p99 = por %p97, %p98
    %p100 = scmp.ne.s32.totalorder %s86, %s87
    %p101 = scmp.eq.s32.totalorder %s18, 7
    %p102 = por %p100, %p101
    %p104 = scmp.ne.s32.totalorder %s87, %s103
    %p105 = scmp.eq.s32.totalorder %s18, 0
    %p106 = por %p104, %p105
    %s108 = sadd.s32 %s107, 1
    %p111 = scmp.eq.s32.totalorder %s12, 7
    %p112 = scmp.ne.s32.totalorder %s107, %s109
    %p113 = scmp.eq.s32.totalorder %s12, 0
    %p114 = por %p112, %p113
    %p115 = scmp.ne.s32.totalorder %s107, %s109
    %p116 = scmp.eq.s32.totalorder %s17, 7
    %p117 = por %p115, %p116
    %p118 = scmp.ne.s32.totalorder %s109, %s110
    %p119 = scmp.eq.s32.totalorder %s17, 0
    %p120 = por %p118, %p119
    %p121 = scmp.ne.s32.totalorder %s109, %s110
    %p122 = scmp.eq.s32.totalorder %s18, 7
    %p123 = por %p121, %p122
    %p125 = scmp.ne.s32.totalorder %s110, %s124
    %p126 = scmp.eq.s32.totalorder %s18, 0
    %p127 = por %p125, %p126
    %s128 = smul.u32 %s19, 2
    %s129 = sadd.s32 %s128, %s21
    %s130 = smul.u32 %s38, 2
    %s131 = sadd.s32 %s130, %s30
    %s132 = ssub.s32 %s20, %s34
    %s133 = ssub.s32 %s129, %s131
    %s134 = sor.u32 %s132, %s133
    %p135 = scmp.eq.s32.totalorder %s134, 0
    %s137 = sadd.s32 %s136, 1
    %s138 = scalar_select %p135, %s136, %s137
    %p141 = pneg %p135
    %p142 = scmp.eq.s32.totalorder %s12, 7
    %p143 = por %p141, %p142
    %p144 = scmp.ne.s32.totalorder %s136, %s139
    %p145 = scmp.eq.s32.totalorder %s12, 0
    %p146 = por %p144, %p145
    %p147 = scmp.ne.s32.totalorder %s136, %s139
    %p148 = scmp.eq.s32.totalorder %s17, 7
    %p149 = por %p147, %p148
    %p150 = scmp.ne.s32.totalorder %s139, %s140
    %p151 = scmp.eq.s32.totalorder %s17, 0
    %p152 = por %p150, %p151
    %p153 = scmp.ne.s32.totalorder %s139, %s140
    %p154 = scmp.eq.s32.totalorder %s18, 7
    %p155 = por %p153, %p154
    %p157 = scmp.ne.s32.totalorder %s140, %s156
    %p158 = scmp.eq.s32.totalorder %s18, 0
    %p159 = por %p157, %p158
    %s160 = ssub.s32 %s19, %s38
    %p161 = scmp.eq.s32.totalorder %s160, 0
    %s163 = sadd.s32 %s162, 1
    %s164 = scalar_select %p161, %s162, %s163
    %p167 = pneg %p161
    %p168 = scmp.eq.s32.totalorder %s12, 7
    %p169 = por %p167, %p168
    %p170 = scmp.ne.s32.totalorder %s162, %s165
    %p171 = scmp.eq.s32.totalorder %s12, 0
    %p172 = por %p170, %p171
    %p173 = scmp.ne.s32.totalorder %s162, %s165
    %p174 = scmp.eq.s32.totalorder %s17, 7
    %p175 = por %p173, %p174
    %p176 = scmp.ne.s32.totalorder %s165, %s166
    %p177 = scmp.eq.s32.totalorder %s17, 0
    %p178 = por %p176, %p177
    %p179 = scmp.ne.s32.totalorder %s165, %s166
    %p180 = scmp.eq.s32.totalorder %s18, 7
    %p181 = por %p179, %p180
    %p183 = scmp.ne.s32.totalorder %s166, %s182
    %p184 = scmp.eq.s32.totalorder %s18, 0
    %p185 = por %p183, %p184
    %s186 = ssub.s32 %s19, %s38
    %p187 = scmp.eq.s32.totalorder %s186, 0
    %s189 = sadd.s32 %s188, 1
    %s190 = scalar_select %p187, %s188, %s189
    %p193 = pneg %p187
    %p194 = scmp.eq.s32.totalorder %s12, 7
    %p195 = por %p193, %p194
    %p196 = scmp.ne.s32.totalorder %s188, %s191
    %p197 = scmp.eq.s32.totalorder %s12, 0
    %p198 = por %p196, %p197
    %p199 = scmp.ne.s32.totalorder %s188, %s191
    %p200 = scmp.eq.s32.totalorder %s17, 7
    %p201 = por %p199, %p200
    %p202 = scmp.ne.s32.totalorder %s191, %s192
    %p203 = scmp.eq.s32.totalorder %s17, 0
    %p204 = por %p202, %p203
    %p205 = scmp.ne.s32.totalorder %s191, %s192
    %p206 = scmp.eq.s32.totalorder %s18, 7
    %p207 = por %p205, %p206
    %p209 = scmp.ne.s32.totalorder %s192, %s208
    %p210 = scmp.eq.s32.totalorder %s18, 0
    %p211 = por %p209, %p210
    %p212 = scmp.le.s32.totalorder 1, %s12
    %p213 = scmp.lt.s32.totalorder %s12, 9
    %p214 = pnand %p212, %p213
    %p215 = pneg %p214
    // Predicated region
    $region9: #{discriminator_block.2} parent=5 // pred_check
      _
    $region10: #{discriminator_block.2} parent=5 // pred_check_branch
      %217 = sbr.rel (%p214) target = $region12
    $region11: #{discriminator_block.2} parent=5 // pred_region
      %s218 = ssub.s32 %s12, 1
      // Predicated region
      $region13: #{discriminator_block.2} parent=11 // pred_check
        %p219 = pneg %p120
      $region14: #{discriminator_block.2} parent=11 // pred_check_branch
        %221 = sbr.rel (%p219) target = $region16
      $region15: #{discriminator_block.2} parent=11 // pred_region
        _
      $region16: #{discriminator_block.2} parent=11 // pred_fallthru
        _
    $region12: #{discriminator_block.2} parent=5 // pred_fallthru
      _
    %p222 = scmp.lt.s32.totalorder %s12, 8
    // Predicated region
    $region17: #{discriminator_block.2} parent=5 // pred_check
      %p223 = pneg %p222
    $region18: #{discriminator_block.2} parent=5 // pred_check_branch
      %225 = sbr.rel (%p223) target = $region20
    $region19: #{discriminator_block.2} parent=5 // pred_region
      // Predicated region
      $region21: #{discriminator_block.2} parent=19 // pred_check
        %p226 = pneg %p57
      $region22: #{discriminator_block.2} parent=19 // pred_check_branch
        %228 = sbr.rel (%p226) target = $region24
      $region23: #{discriminator_block.2} parent=19 // pred_region
        %s229 = smul.u32 %s19, 2
        %s230 = sadd.s32 %s229, %s21
        %s231 = smul.u32 4, %s230
        %s232 = ssub.s32 18, %s231
        %p233 = scmp.lt.s32.totalorder %s232, 4
        %s234 = scalar_select %p233, %s232, 4
        %s235 = smul.u32 4, %s234
        %s236 = smul.u32 %s235, 2
        %p237 = scmp.lt.s32.totalorder %s20, 1
        %s238 = scalar_select %p237, %s20, 1
        %p239 = scmp.lt.s32.totalorder %s231, 17
        %s240 = scalar_select %p239, %s231, 17
        %s241 = smul.addr %s240, 2
        %s242 = smul.addr %s238, 36
        %s243 = sadd.s32 %s241, %s242
        %s244 = smul.addr %s243, 4
        %s245 = scalar_lea.vmem %s0, %s244
        %s246 = smul.u32 %s19, 2
        %s247 = sadd.s32 %s246, %s21
        %s248 = smul.u32 4, %s247
        %s249 = ssub.s32 18, %s248
        %p250 = scmp.lt.s32.totalorder %s249, 4
        %s251 = scalar_select %p250, %s249, 4
        %s252 = smul.u32 4, %s251
        %s253 = smul.u32 %s252, 2
      $region24: #{discriminator_block.2} parent=19 // pred_fallthru
        _
      // Predicated region
      $region25: #{discriminator_block.2} parent=19 // pred_check
        %p254 = pneg %p93
      $region26: #{discriminator_block.2} parent=19 // pred_check_branch
        %256 = sbr.rel (%p254) target = $region28
      $region27: #{discriminator_block.2} parent=19 // pred_region
        %s257 = smul.u32 %s19, 2
        %s258 = sadd.s32 %s257, %s21
        %s259 = sadd.s32 %s258, 1
        %s260 = smul.u32 %s259, 2
        %s261 = smul.u32 2, %s260
        %p262 = scmp.lt.s32.totalorder %s20, 1
        %s263 = scalar_select %p262, %s20, 1
        %p264 = scmp.lt.s32.totalorder %s261, 17
        %s265 = scalar_select %p264, %s261, 17
        %s266 = smul.addr %s265, 2
        %s267 = smul.addr %s263, 36
        %s268 = sadd.s32 %s266, %s267
        %s269 = smul.addr %s268, 4
        %s270 = scalar_lea.vmem %s1, %s269
        %s271 = smul.u32 %s19, 2
        %s272 = sadd.s32 %s271, %s21
        %s273 = sadd.s32 %s272, 1
        %s274 = smul.u32 %s273, 2
        %s275 = smul.u32 2, %s274
      $region28: #{discriminator_block.2} parent=19 // pred_fallthru
        _
    $region20: #{discriminator_block.2} parent=5 // pred_fallthru
      _
    %p276 = scmp.le.s32.totalorder 1, %s12
    %p277 = scmp.lt.s32.totalorder %s12, 9
    %p278 = pnand %p276, %p277
    %p279 = pneg %p278
    // Predicated region
    $region29: #{discriminator_block.2} parent=5 // pred_check
      _
    $region30: #{discriminator_block.2} parent=5 // pred_check_branch
      %281 = sbr.rel (%p278) target = $region32
    $region31: #{discriminator_block.2} parent=5 // pred_region
      %s282 = ssub.s32 %s12, 1
      %s283 = smul.u32 %s22, 2
      %s284 = sadd.s32 %s283, %s24
      %s285 = smul.u32 4, %s284
      %s286 = ssub.s32 18, %s285
      %p287 = scmp.lt.s32.totalorder %s286, 4
      %s288 = scalar_select %p287, %s286, 4
      %s289 = smul.u32 4, %s288
      %s290 = smul.u32 %s289, 2
      %p291 = scmp.lt.s32.totalorder %s23, 1
      %s292 = scalar_select %p291, %s23, 1
      %p293 = scmp.lt.s32.totalorder %s285, 17
      %s294 = scalar_select %p293, %s285, 17
      %s295 = smul.addr %s294, 2
      %s296 = smul.addr %s292, 36
      %s297 = sadd.s32 %s295, %s296
      %s298 = smul.addr %s297, 4
      %s299 = scalar_lea.vmem %s0, %s298
      %p300 = pneg %p63
      %p301 = pneg %p60
      %s302 = smul.u32 %s22, 2
      %s303 = sadd.s32 %s302, %s24
      %s304 = sadd.s32 %s303, 1
      %s305 = smul.u32 %s304, 2
      %s306 = smul.u32 2, %s305
      %p307 = scmp.lt.s32.totalorder %s23, 1
      %s308 = scalar_select %p307, %s23, 1
      %p309 = scmp.lt.s32.totalorder %s306, 17
      %s310 = scalar_select %p309, %s306, 17
      %s311 = smul.addr %s310, 2
      %s312 = smul.addr %s308, 36
      %s313 = sadd.s32 %s311, %s312
      %s314 = smul.addr %s313, 4
      %s315 = scalar_lea.vmem %s1, %s314
      %p316 = pneg %p99
      %p317 = pneg %p96
      %p318 = pneg %p120
      %p319 = pneg %p117
      %p320 = pneg %p152
      %p321 = pneg %p149
      %s322 = smul.u32 %s22, 2
      %s323 = sadd.s32 %s322, %s24
      %s324 = smul.u32 2, %s323
      %p325 = scmp.lt.s32.totalorder %s23, 1
      %s326 = scalar_select %p325, %s23, 1
      %p327 = scmp.lt.s32.totalorder %s324, 7
      %s328 = scalar_select %p327, %s324, 7
      %s329 = smul.addr %s326, 8
      %s330 = sadd.s32 %s328, %s329
      %s331 = smul.addr %s330, 4
      %s332 = scalar_lea.vmem %s3, %s331
      %p333 = pneg %p178
      %p334 = pneg %p175
      %p335 = scmp.lt.s32.totalorder %s22, 1
      %s336 = scalar_select %p335, %s22, 1
      %s337 = scalar_lea.vmem %s4, %s336
      %p338 = pneg %p204
      %p339 = pneg %p201
      %p340 = scmp.lt.s32.totalorder %s22, 1
      %s341 = scalar_select %p340, %s22, 1
      %s342 = scalar_lea.vmem %s5, %s341
      %s343 = smul.u32 %s22, 2
      %s344 = sadd.s32 %s343, %s24
      %s345 = smul.u32 4, %s344
      %s346 = ssub.s32 18, %s345
      %p347 = scmp.lt.s32.totalorder %s346, 4
      %s348 = scalar_select %p347, %s346, 4
      %s349 = smul.u32 4, %s348
      %s350 = smul.u32 %s349, 2
      %p351 = scmp.lt.s32.totalorder %s23, 1
      %s352 = scalar_select %p351, %s23, 1
      %p353 = scmp.lt.s32.totalorder %s345, 17
      %s354 = scalar_select %p353, %s345, 17
      %s355 = smul.addr %s354, 2
      %s356 = smul.addr %s352, 36
      %s357 = sadd.s32 %s355, %s356
      %s358 = smul.addr %s357, 4
      %s359 = scalar_lea.vmem %s0, %s358
      %s360 = smul.u32 %s22, 2
      %s361 = sadd.s32 %s360, %s24
      %s362 = smul.u32 4, %s361
      %s363 = ssub.s32 18, %s362
      %p364 = scmp.lt.s32.totalorder %s363, 4
      %s365 = scalar_select %p364, %s363, 4
      %s366 = smul.u32 4, %s365
      %s367 = smul.u32 %s366, 2
      %s368 = smul.u32 %s22, 2
      %s369 = sadd.s32 %s368, %s24
      %s370 = sadd.s32 %s369, 1
      %s371 = smul.u32 %s370, 2
      %s372 = smul.u32 2, %s371
      %p373 = scmp.lt.s32.totalorder %s23, 1
      %s374 = scalar_select %p373, %s23, 1
      %p375 = scmp.lt.s32.totalorder %s372, 17
      %s376 = scalar_select %p375, %s372, 17
      %s377 = smul.addr %s376, 2
      %s378 = smul.addr %s374, 36
      %s379 = sadd.s32 %s377, %s378
      %s380 = smul.addr %s379, 4
      %s381 = scalar_lea.vmem %s1, %s380
      %s382 = smul.u32 %s22, 2
      %s383 = sadd.s32 %s382, %s24
      %s384 = sadd.s32 %s383, 1
      %s385 = smul.u32 %s384, 2
      %s386 = smul.u32 2, %s385
      %s387 = smul.u32 %s22, 2
      %s388 = sadd.s32 %s387, %s24
      %s389 = smul.u32 2, %s388
      %p390 = scmp.lt.s32.totalorder %s23, 1
      %s391 = scalar_select %p390, %s23, 1
      %p392 = scmp.lt.s32.totalorder %s389, 7
      %s393 = scalar_select %p392, %s389, 7
      %s394 = smul.addr %s391, 8
      %s395 = sadd.s32 %s393, %s394
      %s396 = smul.addr %s395, 4
      %s397 = scalar_lea.vmem %s3, %s396
      %s398 = smul.u32 %s22, 2
      %s399 = sadd.s32 %s398, %s24
      %s400 = smul.u32 2, %s399
      %p401 = scmp.lt.s32.totalorder %s22, 1
      %s402 = scalar_select %p401, %s22, 1
      %s403 = scalar_lea.vmem %s4, %s402
      %p404 = scmp.lt.s32.totalorder %s22, 1
      %s405 = scalar_select %p404, %s22, 1
      %s406 = scalar_lea.vmem %s5, %s405
      %p408 = scmp.eq.s32.totalorder %s23, 0
      %p409 = scmp.eq.s32.totalorder %s24, 0
      %p410 = pnand %p408, %p409
      %p411 = pneg %p410
      // Predicated region
      $region33: #{discriminator_block.2} parent=31 // pred_check
        _
      $region34: #{discriminator_block.2} parent=31 // pred_check_branch
        %413 = sbr.rel (%p410) target = $region36
      $region35: #{discriminator_block.2} parent=31 // pred_region
        %414 = vst [vmem:[%s403] sm:$0x1] 0.0
        %415 = vst [vmem:[%s406] sm:$0x1] 0.0
      $region36: #{discriminator_block.2} parent=31 // pred_fallthru
        _
      %s416 = smul.u32 %s22, 2
      %s417 = sadd.s32 %s416, %s24
      %v418 = vld [vmem:[%s359] sm:$0xf]
      %v419 = vld [vmem:[%s359 + $0x4] sm:$0x1]
      %v420 = vld [vmem:[%s2] sm:$0xf]
      %s421 = scalar_lea.vmem %s2, 4
      %v422 = vld [vmem:[%s421] sm:$0xf]
      %v425 = vunpack.c.l.b16 %v418
      %v426 = vunpack.c.l.b16 %v419
      %v427 = vpack.c.b16 %v426, %v425
      %v429 = vshrl.u32 %v427, 16
      %v431 = vshll.u32 %v427, 16
      %v433 = vrot.slane %v431, 1
      %v434 = vor.u32 %v429, %v433
      %vm435 = vcmask 64512
      %v437 = vsel %vm435, %v434, 0
      %vm439 = vcmask 1043456
      %v441 = vsel %vm439, %v422, 0
      %443 = vmatpush.bf16.msra.mxu0 0
      %444 = vmatpush.bf16.msra.mxu0 0
      %445 = vmatpush.bf16.msra.mxu0 0
      %446 = vmatpush.bf16.msra.mxu0 0
      %447 = vmatpush.bf16.msra.mxu0 0
      %448 = vmatpush.bf16.msra.mxu0 0
      %449 = vmatpush.bf16.msra.mxu0 0
      %450 = vmatpush.bf16.msra.mxu0 %v441
      %451 = vmatmul.bf16.gmra.mxu0 %v437
      %v452 = vpop.f32.mrf.mxu0
      %v453 = vadd.f32 0.0, %v452
      %v454 = vpop.f32.mrf.mxu0
      %455 = vdwg.mxu0
      %v457 = vsel %vm435, %v418, 0
      %v460 = vsel %vm439, %v420, 0
      %462 = vmatpush.bf16.msra.mxu0 0
      %463 = vmatpush.bf16.msra.mxu0 0
      %464 = vmatpush.bf16.msra.mxu0 0
      %465 = vmatpush.bf16.msra.mxu0 0
      %466 = vmatpush.bf16.msra.mxu0 0
      %467 = vmatpush.bf16.msra.mxu0 0
      %468 = vmatpush.bf16.msra.mxu0 0
      %469 = vmatpush.bf16.msra.mxu0 %v460
      %470 = vmatmul.bf16.gmra.mxu0 %v457
      %v471 = vpop.f32.mrf.mxu0
      %v472 = vadd.f32 %v453, %v471
      %v473 = vpop.f32.mrf.mxu0
      %474 = vdwg.mxu0
      %s475 = scalar_lea.vmem %s359, 8
      %v476 = vld [vmem:[%s475] sm:$0xf]
      %v477 = vld [vmem:[%s475 + $0x4] sm:$0x1]
      %s478 = scalar_lea.vmem %s2, 8
      %v479 = vld [vmem:[%s478] sm:$0xf]
      %v481 = vsel %vm435, %v476, 0
      %v484 = vsel %vm439, %v479, 0
      %486 = vmatpush.bf16.msra.mxu0 0
      %487 = vmatpush.bf16.msra.mxu0 0
      %488 = vmatpush.bf16.msra.mxu0 0
      %489 = vmatpush.bf16.msra.mxu0 0
      %490 = vmatpush.bf16.msra.mxu0 0
      %491 = vmatpush.bf16.msra.mxu0 0
      %492 = vmatpush.bf16.msra.mxu0 0
      %493 = vmatpush.bf16.msra.mxu0 %v484
      %494 = vmatmul.bf16.gmra.mxu0 %v481
      %v495 = vpop.f32.mrf.mxu0
      %v496 = vadd.f32 0.0, %v495
      %v497 = vpop.f32.mrf.mxu0
      %498 = vdwg.mxu0
      %v499 = vadd.f32 %v472, %v496
      %s500 = scalar_lea.vmem %s2, 12
      %v501 = vld [vmem:[%s500] sm:$0xf]
      %v504 = vunpack.c.l.b16 %v476
      %v505 = vunpack.c.l.b16 %v477
      %v506 = vpack.c.b16 %v505, %v504
      %v508 = vshrl.u32 %v506, 16
      %v510 = vshll.u32 %v506, 16
      %v512 = vrot.slane %v510, 1
      %v513 = vor.u32 %v508, %v512
      %v515 = vsel %vm435, %v513, 0
      %v518 = vsel %vm439, %v501, 0
      %520 = vmatpush.bf16.msra.mxu0 0
      %521 = vmatpush.bf16.msra.mxu0 0
      %522 = vmatpush.bf16.msra.mxu0 0
      %523 = vmatpush.bf16.msra.mxu0 0
      %524 = vmatpush.bf16.msra.mxu0 0
      %525 = vmatpush.bf16.msra.mxu0 0
      %526 = vmatpush.bf16.msra.mxu0 0
      %527 = vmatpush.bf16.msra.mxu0 %v518
      %528 = vmatmul.bf16.gmra.mxu0 %v515
      %v529 = vpop.f32.mrf.mxu0
      %v530 = vadd.f32 0.0, %v529
      %v531 = vpop.f32.mrf.mxu0
      %532 = vdwg.mxu0
      %v533 = vadd.f32 %v499, %v530
      %s534 = scalar_lea.vmem %s359, 16
      %v535 = vld [vmem:[%s534] sm:$0xf]
      %v536 = vld [vmem:[%s534 + $0x4] sm:$0x1]
      %s537 = scalar_lea.vmem %s2, 16
      %v538 = vld [vmem:[%s537] sm:$0xf]
      %v540 = vsel %vm435, %v535, 0
      %v543 = vsel %vm439, %v538, 0
      %545 = vmatpush.bf16.msra.mxu0 0
      %546 = vmatpush.bf16.msra.mxu0 0
      %547 = vmatpush.bf16.msra.mxu0 0
      %548 = vmatpush.bf16.msra.mxu0 0
      %549 = vmatpush.bf16.msra.mxu0 0
      %550 = vmatpush.bf16.msra.mxu0 0
      %551 = vmatpush.bf16.msra.mxu0 0
      %552 = vmatpush.bf16.msra.mxu0 %v543
      %553 = vmatmul.bf16.gmra.mxu0 %v540
      %v554 = vpop.f32.mrf.mxu0
      %v555 = vadd.f32 0.0, %v554
      %v556 = vpop.f32.mrf.mxu0
      %557 = vdwg.mxu0
      %v558 = vadd.f32 %v533, %v555
      %s559 = scalar_lea.vmem %s2, 20
      %v560 = vld [vmem:[%s559] sm:$0xf]
      %v563 = vunpack.c.l.b16 %v535
      %v564 = vunpack.c.l.b16 %v536
      %v565 = vpack.c.b16 %v564, %v563
      %v567 = vshrl.u32 %v565, 16
      %v569 = vshll.u32 %v565, 16
      %v571 = vrot.slane %v569, 1
      %v572 = vor.u32 %v567, %v571
      %v574 = vsel %vm435, %v572, 0
      %v577 = vsel %vm439, %v560, 0
      %579 = vmatpush.bf16.msra.mxu0 0
      %580 = vmatpush.bf16.msra.mxu0 0
      %581 = vmatpush.bf16.msra.mxu0 0
      %582 = vmatpush.bf16.msra.mxu0 0
      %583 = vmatpush.bf16.msra.mxu0 0
      %584 = vmatpush.bf16.msra.mxu0 0
      %585 = vmatpush.bf16.msra.mxu0 0
      %586 = vmatpush.bf16.msra.mxu0 %v577
      %587 = vmatmul.bf16.gmra.mxu0 %v574
      %v588 = vpop.f32.mrf.mxu0
      %v589 = vadd.f32 0.0, %v588
      %v590 = vpop.f32.mrf.mxu0
      %591 = vdwg.mxu0
      %v592 = vadd.f32 %v558, %v589
      %s593 = scalar_lea.vmem %s359, 24
      %v594 = vld [vmem:[%s593] sm:$0xf]
      %v595 = vld [vmem:[%s593 + $0x4] sm:$0x1]
      %s596 = scalar_lea.vmem %s2, 24
      %v597 = vld [vmem:[%s596] sm:$0xf]
      %v599 = vsel %vm435, %v594, 0
      %v602 = vsel %vm439, %v597, 0
      %604 = vmatpush.bf16.msra.mxu0 0
      %605 = vmatpush.bf16.msra.mxu0 0
      %606 = vmatpush.bf16.msra.mxu0 0
      %607 = vmatpush.bf16.msra.mxu0 0
      %608 = vmatpush.bf16.msra.mxu0 0
      %609 = vmatpush.bf16.msra.mxu0 0
      %610 = vmatpush.bf16.msra.mxu0 0
      %611 = vmatpush.bf16.msra.mxu0 %v602
      %612 = vmatmul.bf16.gmra.mxu0 %v599
      %v613 = vpop.f32.mrf.mxu0
      %v614 = vadd.f32 0.0, %v613
      %v615 = vpop.f32.mrf.mxu0
      %616 = vdwg.mxu0
      %v617 = vadd.f32 %v592, %v614
      %s618 = scalar_lea.vmem %s2, 28
      %v619 = vld [vmem:[%s618] sm:$0xf]
      %v622 = vunpack.c.l.b16 %v594
      %v623 = vunpack.c.l.b16 %v595
      %v624 = vpack.c.b16 %v623, %v622
      %v626 = vshrl.u32 %v624, 16
      %v628 = vshll.u32 %v624, 16
      %v630 = vrot.slane %v628, 1
      %v631 = vor.u32 %v626, %v630
      %v633 = vsel %vm435, %v631, 0
      %v636 = vsel %vm439, %v619, 0
      %638 = vmatpush.bf16.msra.mxu0 0
      %639 = vmatpush.bf16.msra.mxu0 0
      %640 = vmatpush.bf16.msra.mxu0 0
      %641 = vmatpush.bf16.msra.mxu0 0
      %642 = vmatpush.bf16.msra.mxu0 0
      %643 = vmatpush.bf16.msra.mxu0 0
      %644 = vmatpush.bf16.msra.mxu0 0
      %645 = vmatpush.bf16.msra.mxu0 %v636
      %646 = vmatmul.bf16.gmra.mxu0 %v633
      %v647 = vpop.f32.mrf.mxu0
      %v648 = vadd.f32 0.0, %v647
      %v649 = vpop.f32.mrf.mxu0
      %650 = vdwg.mxu0
      %v651 = vadd.f32 %v617, %v648
      %s652 = smul.u32 %s417, 2
      %p653 = scmp.lt.s32.totalorder %s652, 8
      %s654 = scalar_select %p653, 1, 0
      %v655 = vstv %s654
      %vm656 = vcmp.eq.s32.totalorder %v655, 1
      %v657 = vsel %vm656, %v651, 0.0
      %v658 = vpack.c.bf16 %v657, %v657
      %659 = vst [vmem:[%s397] sm:$0xf] %v658
      %v660 = vld [vmem:[%s403] sm:$0x1]
      %v661 = vrot.slane %v657, 4
      %v662 = vadd.f32 %v657, %v661
      %v663 = vrot.slane %v662, 2
      %v664 = vadd.f32 %v662, %v663
      %v665 = vrot.slane %v664, 1
      %v666 = vadd.f32 %v664, %v665
      %v667 = vadd.f32 %v660, %v666
      %668 = vst [vmem:[%s403] sm:$0x1] %v667
      %v669 = vld [vmem:[%s406] sm:$0x1]
      %v670 = vmul.f32 %v657, %v657
      %v671 = vrot.slane %v670, 4
      %v672 = vadd.f32 %v670, %v671
      %v673 = vrot.slane %v672, 2
      %v674 = vadd.f32 %v672, %v673
      %v675 = vrot.slane %v674, 1
      %v676 = vadd.f32 %v674, %v675
      %v677 = vadd.f32 %v669, %v676
      %678 = vst [vmem:[%s406] sm:$0x1] %v677
      %v679 = vld [vmem:[%s534] sm:$0xf]
      %v680 = vld [vmem:[%s534 + $0x4] sm:$0x1]
      %v681 = vld [vmem:[%s2] sm:$0xf]
      %v682 = vld [vmem:[%s421] sm:$0xf]
      %v685 = vunpack.c.l.b16 %v679
      %v686 = vunpack.c.l.b16 %v680
      %v687 = vpack.c.b16 %v686, %v685
      %v689 = vshrl.u32 %v687, 16
      %v691 = vshll.u32 %v687, 16
      %v693 = vrot.slane %v691, 1
      %v694 = vor.u32 %v689, %v693
      %v696 = vsel %vm435, %v694, 0
      %v699 = vsel %vm439, %v682, 0
      %701 = vmatpush.bf16.msra.mxu0 0
      %702 = vmatpush.bf16.msra.mxu0 0
      %703 = vmatpush.bf16.msra.mxu0 0
      %704 = vmatpush.bf16.msra.mxu0 0
      %705 = vmatpush.bf16.msra.mxu0 0
      %706 = vmatpush.bf16.msra.mxu0 0
      %707 = vmatpush.bf16.msra.mxu0 0
      %708 = vmatpush.bf16.msra.mxu0 %v699
      %709 = vmatmul.bf16.gmra.mxu0 %v696
      %v710 = vpop.f32.mrf.mxu0
      %v711 = vadd.f32 0.0, %v710
      %v712 = vpop.f32.mrf.mxu0
      %713 = vdwg.mxu0
      %v715 = vsel %vm435, %v679, 0
      %v718 = vsel %vm439, %v681, 0
      %720 = vmatpush.bf16.msra.mxu0 0
      %721 = vmatpush.bf16.msra.mxu0 0
      %722 = vmatpush.bf16.msra.mxu0 0
      %723 = vmatpush.bf16.msra.mxu0 0
      %724 = vmatpush.bf16.msra.mxu0 0
      %725 = vmatpush.bf16.msra.mxu0 0
      %726 = vmatpush.bf16.msra.mxu0 0
      %727 = vmatpush.bf16.msra.mxu0 %v718
      %728 = vmatmul.bf16.gmra.mxu0 %v715
      %v729 = vpop.f32.mrf.mxu0
      %v730 = vadd.f32 %v711, %v729
      %v731 = vpop.f32.mrf.mxu0
      %732 = vdwg.mxu0
      %v733 = vld [vmem:[%s593] sm:$0xf]
      %v734 = vld [vmem:[%s593 + $0x4] sm:$0x1]
      %v735 = vld [vmem:[%s478] sm:$0xf]
      %v737 = vsel %vm435, %v733, 0
      %v740 = vsel %vm439, %v735, 0
      %742 = vmatpush.bf16.msra.mxu0 0
      %743 = vmatpush.bf16.msra.mxu0 0
      %744 = vmatpush.bf16.msra.mxu0 0
      %745 = vmatpush.bf16.msra.mxu0 0
      %746 = vmatpush.bf16.msra.mxu0 0
      %747 = vmatpush.bf16.msra.mxu0 0
      %748 = vmatpush.bf16.msra.mxu0 0
      %749 = vmatpush.bf16.msra.mxu0 %v740
      %750 = vmatmul.bf16.gmra.mxu0 %v737
      %v751 = vpop.f32.mrf.mxu0
      %v752 = vadd.f32 0.0, %v751
      %v753 = vpop.f32.mrf.mxu0
      %754 = vdwg.mxu0
      %v755 = vadd.f32 %v730, %v752
      %v756 = vld [vmem:[%s500] sm:$0xf]
      %v759 = vunpack.c.l.b16 %v733
      %v760 = vunpack.c.l.b16 %v734
      %v761 = vpack.c.b16 %v760, %v759
      %v763 = vshrl.u32 %v761, 16
      %v765 = vshll.u32 %v761, 16
      %v767 = vrot.slane %v765, 1
      %v768 = vor.u32 %v763, %v767
      %v770 = vsel %vm435, %v768, 0
      %v773 = vsel %vm439, %v756, 0
      %775 = vmatpush.bf16.msra.mxu0 0
      %776 = vmatpush.bf16.msra.mxu0 0
      %777 = vmatpush.bf16.msra.mxu0 0
      %778 = vmatpush.bf16.msra.mxu0 0
      %779 = vmatpush.bf16.msra.mxu0 0
      %780 = vmatpush.bf16.msra.mxu0 0
      %781 = vmatpush.bf16.msra.mxu0 0
      %782 = vmatpush.bf16.msra.mxu0 %v773
      %783 = vmatmul.bf16.gmra.mxu0 %v770
      %v784 = vpop.f32.mrf.mxu0
      %v785 = vadd.f32 0.0, %v784
      %v786 = vpop.f32.mrf.mxu0
      %787 = vdwg.mxu0
      %v788 = vadd.f32 %v755, %v785
      %v789 = vld [vmem:[%s381] sm:$0xf]
      %v790 = vld [vmem:[%s381 + $0x4] sm:$0x1]
      %v791 = vld [vmem:[%s537] sm:$0xf]
      %v793 = vsel %vm435, %v789, 0
      %v796 = vsel %vm439, %v791, 0
      %798 = vmatpush.bf16.msra.mxu0 0
      %799 = vmatpush.bf16.msra.mxu0 0
      %800 = vmatpush.bf16.msra.mxu0 0
      %801 = vmatpush.bf16.msra.mxu0 0
      %802 = vmatpush.bf16.msra.mxu0 0
      %803 = vmatpush.bf16.msra.mxu0 0
      %804 = vmatpush.bf16.msra.mxu0 0
      %805 = vmatpush.bf16.msra.mxu0 %v796
      %806 = vmatmul.bf16.gmra.mxu0 %v793
      %v807 = vpop.f32.mrf.mxu0
      %v808 = vadd.f32 0.0, %v807
      %v809 = vpop.f32.mrf.mxu0
      %810 = vdwg.mxu0
      %v811 = vadd.f32 %v788, %v808
      %v812 = vld [vmem:[%s559] sm:$0xf]
      %v815 = vunpack.c.l.b16 %v789
      %v816 = vunpack.c.l.b16 %v790
      %v817 = vpack.c.b16 %v816, %v815
      %v819 = vshrl.u32 %v817, 16
      %v821 = vshll.u32 %v817, 16
      %v823 = vrot.slane %v821, 1
      %v824 = vor.u32 %v819, %v823
      %v826 = vsel %vm435, %v824, 0
      %v829 = vsel %vm439, %v812, 0
      %831 = vmatpush.bf16.msra.mxu0 0
      %832 = vmatpush.bf16.msra.mxu0 0
      %833 = vmatpush.bf16.msra.mxu0 0
      %834 = vmatpush.bf16.msra.mxu0 0
      %835 = vmatpush.bf16.msra.mxu0 0
      %836 = vmatpush.bf16.msra.mxu0 0
      %837 = vmatpush.bf16.msra.mxu0 0
      %838 = vmatpush.bf16.msra.mxu0 %v829
      %839 = vmatmul.bf16.gmra.mxu0 %v826
      %v840 = vpop.f32.mrf.mxu0
      %v841 = vadd.f32 0.0, %v840
      %v842 = vpop.f32.mrf.mxu0
      %843 = vdwg.mxu0
      %v844 = vadd.f32 %v811, %v841
      %s845 = scalar_lea.vmem %s381, 8
      %v846 = vld [vmem:[%s845] sm:$0xf]
      %v847 = vld [vmem:[%s845 + $0x4] sm:$0x1]
      %v848 = vld [vmem:[%s596] sm:$0xf]
      %v850 = vsel %vm435, %v846, 0
      %v853 = vsel %vm439, %v848, 0
      %855 = vmatpush.bf16.msra.mxu0 0
      %856 = vmatpush.bf16.msra.mxu0 0
      %857 = vmatpush.bf16.msra.mxu0 0
      %858 = vmatpush.bf16.msra.mxu0 0
      %859 = vmatpush.bf16.msra.mxu0 0
      %860 = vmatpush.bf16.msra.mxu0 0
      %861 = vmatpush.bf16.msra.mxu0 0
      %862 = vmatpush.bf16.msra.mxu0 %v853
      %863 = vmatmul.bf16.gmra.mxu0 %v850
      %v864 = vpop.f32.mrf.mxu0
      %v865 = vadd.f32 0.0, %v864
      %v866 = vpop.f32.mrf.mxu0
      %867 = vdwg.mxu0
      %v868 = vadd.f32 %v844, %v865
      %v869 = vld [vmem:[%s618] sm:$0xf]
      %v872 = vunpack.c.l.b16 %v846
      %v873 = vunpack.c.l.b16 %v847
      %v874 = vpack.c.b16 %v873, %v872
      %v876 = vshrl.u32 %v874, 16
      %v878 = vshll.u32 %v874, 16
      %v880 = vrot.slane %v878, 1
      %v881 = vor.u32 %v876, %v880
      %v883 = vsel %vm435, %v881, 0
      %v886 = vsel %vm439, %v869, 0
      %888 = vmatpush.bf16.msra.mxu0 0
      %889 = vmatpush.bf16.msra.mxu0 0
      %890 = vmatpush.bf16.msra.mxu0 0
      %891 = vmatpush.bf16.msra.mxu0 0
      %892 = vmatpush.bf16.msra.mxu0 0
      %893 = vmatpush.bf16.msra.mxu0 0
      %894 = vmatpush.bf16.msra.mxu0 0
      %895 = vmatpush.bf16.msra.mxu0 %v886
      %896 = vmatmul.bf16.gmra.mxu0 %v883
      %v897 = vpop.f32.mrf.mxu0
      %v898 = vadd.f32 0.0, %v897
      %v899 = vpop.f32.mrf.mxu0
      %900 = vdwg.mxu0
      %v901 = vadd.f32 %v868, %v898
      %s902 = sadd.s32 %s652, 1
      %p903 = scmp.lt.s32.totalorder %s902, 8
      %s904 = scalar_select %p903, 1, 0
      %v905 = vstv %s904
      %vm906 = vcmp.eq.s32.totalorder %v905, 1
      %v907 = vsel %vm906, %v901, 0.0
      %v908 = vpack.c.bf16 %v907, %v907
      %s909 = scalar_lea.vmem %s397, 4
      %910 = vst [vmem:[%s909] sm:$0xf] %v908
      %v911 = vld [vmem:[%s403] sm:$0x1]
      %v912 = vrot.slane %v907, 4
      %v913 = vadd.f32 %v907, %v912
      %v914 = vrot.slane %v913, 2
      %v915 = vadd.f32 %v913, %v914
      %v916 = vrot.slane %v915, 1
      %v917 = vadd.f32 %v915, %v916
      %v918 = vadd.f32 %v911, %v917
      %919 = vst [vmem:[%s403] sm:$0x1] %v918
      %v920 = vld [vmem:[%s406] sm:$0x1]
      %v921 = vmul.f32 %v907, %v907
      %v922 = vrot.slane %v921, 4
      %v923 = vadd.f32 %v921, %v922
      %v924 = vrot.slane %v923, 2
      %v925 = vadd.f32 %v923, %v924
      %v926 = vrot.slane %v925, 1
      %v927 = vadd.f32 %v925, %v926
      %v928 = vadd.f32 %v920, %v927
      %929 = vst [vmem:[%s406] sm:$0x1] %v928
      %s930 = smul.u32 %s22, 2
      %s931 = sadd.s32 %s930, %s24
      %s932 = smul.u32 2, %s931
      %p933 = scmp.lt.s32.totalorder %s23, 1
      %s934 = scalar_select %p933, %s23, 1
      %p935 = scmp.lt.s32.totalorder %s932, 7
      %s936 = scalar_select %p935, %s932, 7
      %s937 = smul.addr %s934, 8
      %s938 = sadd.s32 %s936, %s937
      %s939 = smul.addr %s938, 4
      %s940 = scalar_lea.vmem %s3, %s939
      %p941 = scmp.lt.s32.totalorder %s22, 1
      %s942 = scalar_select %p941, %s22, 1
      %s943 = scalar_lea.vmem %s4, %s942
      %p944 = scmp.lt.s32.totalorder %s22, 1
      %s945 = scalar_select %p944, %s22, 1
      %s946 = scalar_lea.vmem %s5, %s945
      // Predicated region
      $region37: #{discriminator_block.2} parent=31 // pred_check
        %p947 = pneg %p149
      $region38: #{discriminator_block.2} parent=31 // pred_check_branch
        %949 = sbr.rel (%p947) target = $region40
      $region39: #{discriminator_block.2} parent=31 // pred_region
        %s950 = smul.u32 %s22, 2
        %s951 = sadd.s32 %s950, %s24
        %s952 = smul.u32 2, %s951
      $region40: #{discriminator_block.2} parent=31 // pred_fallthru
        _
      // Predicated region
      $region41: #{discriminator_block.2} parent=31 // pred_check
        %p953 = pneg %p175
      $region42: #{discriminator_block.2} parent=31 // pred_check_branch
        %955 = sbr.rel (%p953) target = $region44
      $region43: #{discriminator_block.2} parent=31 // pred_region
        _
      $region44: #{discriminator_block.2} parent=31 // pred_fallthru
        _
      // Predicated region
      $region45: #{discriminator_block.2} parent=31 // pred_check
        %p956 = pneg %p201
      $region46: #{discriminator_block.2} parent=31 // pred_check_branch
        %958 = sbr.rel (%p956) target = $region48
      $region47: #{discriminator_block.2} parent=31 // pred_region
        _
      $region48: #{discriminator_block.2} parent=31 // pred_fallthru
        _
    $region32: #{discriminator_block.2} parent=5 // pred_fallthru
      _
    %p959 = scmp.le.s32.totalorder 2, %s12
    // Predicated region
    $region49: #{discriminator_block.2} parent=5 // pred_check
      %p960 = pneg %p959
    $region50: #{discriminator_block.2} parent=5 // pred_check_branch
      %962 = sbr.rel (%p960) target = $region52
    $region51: #{discriminator_block.2} parent=5 // pred_region
      %s963 = ssub.s32 %s12, 2
      // Predicated region
      $region53: #{discriminator_block.2} parent=51 // pred_check
        %p964 = pneg %p155
      $region54: #{discriminator_block.2} parent=51 // pred_check_branch
        %966 = sbr.rel (%p964) target = $region56
      $region55: #{discriminator_block.2} parent=51 // pred_region
        %s967 = smul.u32 %s25, 2
        %s968 = sadd.s32 %s967, %s27
        %s969 = smul.u32 2, %s968
        %p970 = scmp.lt.s32.totalorder %s26, 1
        %s971 = scalar_select %p970, %s26, 1
        %p972 = scmp.lt.s32.totalorder %s969, 7
        %s973 = scalar_select %p972, %s969, 7
        %s974 = smul.addr %s971, 8
        %s975 = sadd.s32 %s973, %s974
        %s976 = smul.addr %s975, 4
        %s977 = scalar_lea.vmem %s3, %s976
      $region56: #{discriminator_block.2} parent=51 // pred_fallthru
        _
      // Predicated region
      $region57: #{discriminator_block.2} parent=51 // pred_check
        %p978 = pneg %p181
      $region58: #{discriminator_block.2} parent=51 // pred_check_branch
        %980 = sbr.rel (%p978) target = $region60
      $region59: #{discriminator_block.2} parent=51 // pred_region
        %p981 = scmp.lt.s32.totalorder %s25, 1
        %s982 = scalar_select %p981, %s25, 1
        %s983 = scalar_lea.vmem %s4, %s982
      $region60: #{discriminator_block.2} parent=51 // pred_fallthru
        _
      // Predicated region
      $region61: #{discriminator_block.2} parent=51 // pred_check
        %p984 = pneg %p207
      $region62: #{discriminator_block.2} parent=51 // pred_check_branch
        %986 = sbr.rel (%p984) target = $region64
      $region63: #{discriminator_block.2} parent=51 // pred_region
        %p987 = scmp.lt.s32.totalorder %s25, 1
        %s988 = scalar_select %p987, %s25, 1
        %s989 = scalar_lea.vmem %s5, %s988
      $region64: #{discriminator_block.2} parent=51 // pred_fallthru
        _
    $region52: #{discriminator_block.2} parent=5 // pred_fallthru
      _
  $region6: #{discriminator_block.2} parent=0 // loop_footer
    %s16 = sadd.s32 1, %s12
  $region7: #{discriminator_block.2} parent=0 // loop_footer_branch
    %11 = sbr.rel target = $region3
  $region8: #{discriminator_block.2} parent=0 // loop_exit
    _

</llo_original>
